<compile_context>
chip_gen: v6e
topology: v6e:2x2x1
jax: 0.10.0
libtpu: 0.0.40
codegen_flags: <defaults>
</compile_context>

<pallas_src>
import functools

import numpy as np
import jax
import jax.numpy as jnp
from jax import lax
from jax.experimental import pallas as pl
from jax.experimental.pallas import tpu as pltpu


def _round_up(x, m):
    return ((x + m - 1) // m) * m


# -----------------------------------------------------------------------------
# Pallas kernel: tiled MXU matmul with K-reduction accumulator.
# Used for (a) fused two-stream projection and (b) im2col correlation.
# -----------------------------------------------------------------------------
def _matmul_kernel(a_ref, b_ref, o_ref, acc_ref):
    @pl.when(pl.program_id(2) == 0)
    def _():
        acc_ref[...] = jnp.zeros_like(acc_ref)

    acc_ref[...] += jnp.dot(a_ref[...], b_ref[...],
                            preferred_element_type=jnp.float32)

    @pl.when(pl.program_id(2) == pl.num_programs(2) - 1)
    def _():
        o_ref[...] = acc_ref[...]


def pallas_matmul(a, b):
    """f32 matmul a @ b with automatic padding to TPU-friendly tiles."""
    m, k = a.shape
    k2, n = b.shape
    assert k == k2

    tn = 128
    np_ = _round_up(n, tn)

    # K tiling: single full-K block when small (block == full dim is legal),
    # otherwise 1024-wide K tiles (multiple of 128) to bound VMEM per step.
    if k <= 2048:
        kp = _round_up(k, 8)
        tk = kp
    else:
        tk = 1024
        kp = _round_up(k, tk)

    if m <= 256:
        mp = _round_up(m, 8)
        tm = mp
    else:
        tm = 128
        mp = _round_up(m, tm)

    a_p = jnp.pad(a.astype(jnp.float32), ((0, mp - m), (0, kp - k)))
    b_p = jnp.pad(b.astype(jnp.float32), ((0, kp - k), (0, np_ - n)))

    grid = (mp // tm, np_ // tn, kp // tk)
    out = pl.pallas_call(
        _matmul_kernel,
        out_shape=jax.ShapeDtypeStruct((mp, np_), jnp.float32),
        grid_spec=pltpu.PrefetchScalarGridSpec(
            num_scalar_prefetch=0,
            grid=grid,
            in_specs=[pl.BlockSpec((tm, tk), lambda i, j, kk: (i, kk)),
                      pl.BlockSpec((tk, tn), lambda i, j, kk: (kk, j))],
            out_specs=pl.BlockSpec((tm, tn), lambda i, j, kk: (i, j)),
            scratch_shapes=[pltpu.VMEM((tm, tn), jnp.float32)]),
        compiler_params=pltpu.CompilerParams(
            dimension_semantics=("parallel", "parallel", "arbitrary")),
    )(a_p, b_p)
    return out[:m, :n]


# -----------------------------------------------------------------------------
# Fused two-stream projection + 'add' fusion in pixels-last orientation:
#   out[c_out, pix] = sum_c w1[c,c_out]*x1[c,pix] + b1[c_out]
#                   + sum_c w2[c,c_out]*x2[c,pix] + b2[c_out]
# Streams are concatenated along K and the biases folded in via a ones-row,
# so the whole thing is ONE MXU matmul, emitted lane-dense (pixels last).
# -----------------------------------------------------------------------------
def fused_two_stream_project(x1_cp, x2_cp, w1, b1, w2, b2):
    c_in, npix = x1_cp.shape
    ones = jnp.ones((1, npix), jnp.float32)
    x_aug = jnp.concatenate([x1_cp, x2_cp, ones], axis=0)            # (2C+1, N)
    w_aug = jnp.concatenate([w1, w2, (b1 + b2)[None, :]], axis=0).T  # (Cout, 2C+1)
    return pallas_matmul(w_aug, x_aug)                               # (Cout, N)


# -----------------------------------------------------------------------------
# Correlation: F.conv2d(logits, kernel, padding=pad) as im2col matmul.
# Patch extraction (a gather) stays in plain JAX; the contraction runs on the
# MXU with a lane-dense (NR, OH*OW) output.
# -----------------------------------------------------------------------------
def _im2col(x, kh, kw):
    # x: (C, HP, WP) -> (C*KH*KW, OH*OW) with row ordering (c, dy, dx)
    c, hp, wp = x.shape
    oh, ow = hp - kh + 1, wp - kw + 1
    ridx = jnp.arange(oh)[:, None] + jnp.arange(kh)[None, :]   # (oh, kh)
    cidx = jnp.arange(ow)[:, None] + jnp.arange(kw)[None, :]   # (ow, kw)
    g = x[:, ridx, :]              # (c, oh, kh, wp)
    g = g[:, :, :, cidx]           # (c, oh, kh, ow, kw)
    g = jnp.transpose(g, (0, 2, 4, 1, 3))                      # (c, kh, kw, oh, ow)
    return g.reshape(c * kh * kw, oh * ow)


def correlate_matmul(logits, kern, pad):
    # logits: (C, Hp, Wp); kern: (NR, C, KH, KW) -> (NR, OH, OW)
    c, hp, wp = logits.shape
    nr, _, kh, kw = kern.shape
    x = jnp.pad(logits, ((0, 0), (pad, pad), (pad, pad)))
    oh, ow = hp + 2 * pad - kh + 1, wp + 2 * pad - kw + 1
    # TODO(synk): at full CLIPort sizes the im2col patch matrix should be
    # streamed tile-by-tile into the matmul via BlockSpec instead of being
    # materialized in HBM up front.
    patches = _im2col(x, kh, kw)                 # (C*KH*KW, OH*OW)
    kmat = kern.reshape(nr, c * kh * kw)         # (NR, C*KH*KW)
    out = pallas_matmul(kmat, patches)           # (NR, OH*OW), lane-dense
    return out.reshape(nr, oh, ow)


# -----------------------------------------------------------------------------
# Pallas kernel: softmax over ALL elements (PyTorch flattens to (1, prod)),
# computed on a lane-dense (rows, 128) view with an EUP/exact reciprocal.
# -----------------------------------------------------------------------------
def _softmax_all_kernel(x_ref, o_ref):
    x = x_ref[...]
    m = jnp.max(x)
    e = jnp.exp(x - m)
    s = jnp.sum(e).reshape(1, 1)
    o_ref[...] = e * pl.reciprocal(s, approx=False)


def softmax_all_lane_dense(x):
    n = x.size
    cols = 128
    rows = _round_up(n, cols) // cols
    flat = x.reshape(-1)
    flat = jnp.pad(flat, (0, rows * cols - n), constant_values=-1e30)
    mat = flat.reshape(rows, cols)
    vmem = pl.BlockSpec(memory_space=pltpu.MemorySpace.VMEM)
    out = pl.pallas_call(
        _softmax_all_kernel,
        out_shape=jax.ShapeDtypeStruct((rows, cols), jnp.float32),
        in_specs=[vmem],
        out_specs=vmem,
    )(mat)
    return out.reshape(-1)[:n].reshape(x.shape)


# -----------------------------------------------------------------------------
# Glue (plain JAX): rotation about a pivot + bilinear resize (gather-heavy,
# data-dependent indexing -> kept outside Pallas), fully traceable (no Python
# ints derived from runtime values).
# -----------------------------------------------------------------------------
def rotate_chw_bilinear(img, angle_deg, pivot_rc):
    """Rotate (C, H, W) content by angle_deg about pivot (row, col), bilinear,
    zeros outside (mirrors the kornia-based ImageRotator).  Fully traced."""
    c_dim, h, w = img.shape
    theta = angle_deg * (jnp.pi / 180.0)
    cth, sth = jnp.cos(theta), jnp.sin(theta)
    py, px = pivot_rc[0], pivot_rc[1]
    ys = jnp.arange(h, dtype=jnp.float32)[:, None]
    xs = jnp.arange(w, dtype=jnp.float32)[None, :]
    dy = ys - py
    dx = xs - px
    src_y = cth * dy - sth * dx + py
    src_x = sth * dy + cth * dx + px
    y0 = jnp.floor(src_y)
    x0 = jnp.floor(src_x)
    wy = src_y - y0
    wx = src_x - x0

    def sample(yy, xx):
        valid = (yy >= 0) & (yy <= h - 1) & (xx >= 0) & (xx <= w - 1)
        yc = jnp.clip(yy, 0, h - 1).astype(jnp.int32)
        xc = jnp.clip(xx, 0, w - 1).astype(jnp.int32)
        vals = img[:, yc, xc]
        return jnp.where(valid[None, :, :], vals, 0.0)

    v00 = sample(y0, x0)
    v01 = sample(y0, x0 + 1)
    v10 = sample(y0 + 1, x0)
    v11 = sample(y0 + 1, x0 + 1)
    top = v00 * (1.0 - wx) + v01 * wx
    bot = v10 * (1.0 - wx) + v11 * wx
    return top * (1.0 - wy) + bot * wy


def resize_bilinear_torch(x, out_h, out_w):
    """F.interpolate(mode='bilinear', align_corners=False) on (NR, IH, IW)."""
    # TODO(synk): bilinear resize is an index/gather op; kept in plain JAX glue.
    _, ih, iw = x.shape

    def src_idx(out_size, in_size):
        scale = in_size / out_size
        s = (np.arange(out_size, dtype=np.float64) + 0.5) * scale - 0.5
        s = np.maximum(s, 0.0)
        i0 = np.minimum(np.floor(s).astype(np.int32), in_size - 1)
        i1 = np.minimum(i0 + 1, in_size - 1)
        w = (s - i0).astype(np.float32)
        return i0, i1, w

    y0, y1, wy = src_idx(out_h, ih)
    x0, x1, wx = src_idx(out_w, iw)
    rows = x[:, y0, :] * (1.0 - wy)[None, :, None] + x[:, y1, :] * wy[None, :, None]
    out = rows[:, :, x0] * (1.0 - wx)[None, None, :] + rows[:, :, x1] * wx[None, None, :]
    return out


# -----------------------------------------------------------------------------
# Module replica
# -----------------------------------------------------------------------------
class TransportImageGoalFusionPallas:
    """Pallas/JAX re-implementation of cliport's TransportImageGoalFusion.

    The external stream networks (models.names[...]) and the fusion module
    (fusion.names[...]) live outside the given code; they are replaced by
    deterministic per-pixel linear projections (1x1-conv stand-ins) and an
    'add' fusion.  The hot path — fused stream matmuls, the conv2d
    correlation (im2col matmul), and the global softmax — runs inside Pallas
    TPU kernels on the MXU with lane-dense layouts.
    """

    output_dim = 3
    kernel_dim = 3

    def __init__(self, in_shape, n_rotations, crop_size, key):
        self.in_shape = tuple(in_shape)
        self.n_rotations = n_rotations
        self.crop_size = crop_size
        self.pad_size = crop_size // 2
        c_in = in_shape[2]
        ks = jax.random.split(key, 8)
        s = 0.5
        self.w_key1 = jax.random.normal(ks[0], (c_in, self.output_dim), jnp.float32) * s
        self.b_key1 = jax.random.normal(ks[1], (self.output_dim,), jnp.float32) * s
        self.w_key2 = jax.random.normal(ks[2], (c_in, self.output_dim), jnp.float32) * s
        self.b_key2 = jax.random.normal(ks[3], (self.output_dim,), jnp.float32) * s
        self.w_qry1 = jax.random.normal(ks[4], (c_in, self.kernel_dim), jnp.float32) * s
        self.b_qry1 = jax.random.normal(ks[5], (self.kernel_dim,), jnp.float32) * s
        self.w_qry2 = jax.random.normal(ks[6], (c_in, self.kernel_dim), jnp.float32) * s
        self.b_qry2 = jax.random.normal(ks[7], (self.kernel_dim,), jnp.float32) * s
        # One trace covers every pivot p (traced int32 array, not Python ints).
        self._forward_jit = jax.jit(self._forward_impl, static_argnames=("softmax",))

    # ------------------------------------------------------------------ #
    def _forward_impl(self, inp_img, goal_img, p_arr, softmax=True):
        pad = self.pad_size
        c_in = self.in_shape[2]
        nr = self.n_rotations
        cs = self.crop_size

        # pad H and W (channels untouched), mirror np.pad(..., 'constant')
        in_pad = jnp.pad(inp_img.astype(jnp.float32), ((pad, pad), (pad, pad), (0, 0)))
        goal_pad = jnp.pad(goal_img.astype(jnp.float32), ((pad, pad), (pad, pad), (0, 0)))
        in_chw = jnp.transpose(in_pad, (2, 0, 1))        # (C, Hp, Wp)
        goal_chw = jnp.transpose(goal_pad, (2, 0, 1))
        hp, wp = in_chw.shape[1], in_chw.shape[2]

        pv = p_arr.astype(jnp.int32) + pad               # traced pivot
        pv_f = pv.astype(jnp.float32)

        # rotate about pivot (vmapped over all rotations) + dynamic crop
        angles = jnp.arange(nr, dtype=jnp.float32) * (360.0 / nr)
        rot_in = jax.vmap(lambda a: rotate_chw_bilinear(in_chw, a, pv_f))(angles)
        rot_goal = jax.vmap(lambda a: rotate_chw_bilinear(goal_chw, a, pv_f))(angles)
        start = (jnp.int32(0), jnp.int32(0), pv[0] - pad, pv[1] - pad)
        in_crop = lax.dynamic_slice(rot_in, start, (nr, c_in, cs, cs))
        goal_crop = lax.dynamic_slice(rot_goal, start, (nr, c_in, cs, cs))

        # ---- key streams + fusion (single Pallas MXU matmul, pixels-last) ----
        x1 = in_chw.reshape(c_in, hp * wp)
        x2 = goal_chw.reshape(c_in, hp * wp)
        logits = fused_two_stream_project(x1, x2, self.w_key1, self.b_key1,
                                          self.w_key2, self.b_key2)
        logits = logits.reshape(self.output_dim, hp, wp)      # (C, Hp, Wp)

        # ---- query streams + fusion (single Pallas MXU matmul) ----
        q1 = jnp.transpose(in_crop, (1, 0, 2, 3)).reshape(c_in, nr * cs * cs)
        q2 = jnp.transpose(goal_crop, (1, 0, 2, 3)).reshape(c_in, nr * cs * cs)
        kflat = fused_two_stream_project(q1, q2, self.w_qry1, self.b_qry1,
                                         self.w_qry2, self.b_qry2)
        kern = jnp.transpose(kflat.reshape(self.kernel_dim, nr, cs, cs),
                             (1, 0, 2, 3))                    # (NR, Cout, cs, cs)

        # ---- correlate: F.conv2d(logits, kernel, padding=pad) as im2col matmul ----
        conv_out = correlate_matmul(logits, kern, pad)        # (NR, OH, OW)

        # F.interpolate -> (Hp, Wp), then strip the pad margin
        out = resize_bilinear_torch(conv_out, hp, wp)
        out = out[:, pad:-pad, pad:-pad]                      # (NR, H, W)

        if softmax:
            return softmax_all_lane_dense(out)                # (NR, H, W)
        return out[None]                                      # (1, NR, H, W)

    # ------------------------------------------------------------------ #
    def forward(self, inp_img, goal_img, p, softmax=True):
        p_arr = jnp.asarray(p, dtype=jnp.int32)
        return self._forward_jit(inp_img, goal_img, p_arr, softmax=softmax)


if __name__ == "__main__":
    H, W, C_IN = 16, 16, 4
    CROP_SIZE = 8
    N_ROT = 4

    key = jax.random.PRNGKey(0)
    k_in, k_goal, k_params = jax.random.split(key, 3)
    inp_img = jax.random.normal(k_in, (H, W, C_IN), jnp.float32)
    goal_img = jax.random.normal(k_goal, (H, W, C_IN), jnp.float32)
    p = (7, 9)

    model = TransportImageGoalFusionPallas(
        in_shape=(H, W, C_IN), n_rotations=N_ROT, crop_size=CROP_SIZE, key=k_params)

    out = model.forward(inp_img, goal_img, p, softmax=True)
    out = jax.block_until_ready(out)

    assert out.shape == (N_ROT, H, W), out.shape
    total = float(jnp.sum(out))
    assert np.isfinite(total) and abs(total - 1.0) < 1e-3, total
    print("KERNEL_OK")
</pallas_src>

<mosaic_0001>
module attributes {stable_mosaic.version = 11 : i64} {
  func.func @_matmul_kernel(%arg0: i32, %arg1: i32, %arg2: i32, %arg3: memref<8x16xf32, #tpu.memory_space<vmem>>, %arg4: memref<16x128xf32, #tpu.memory_space<vmem>>, %arg5: memref<8x128xf32, #tpu.memory_space<vmem>>, %arg6: memref<8x128xf32, #tpu.memory_space<vmem>>) attributes {dimension_semantics = [#tpu.dimension_semantics<parallel>, #tpu.dimension_semantics<parallel>, #tpu.dimension_semantics<arbitrary>], iteration_bounds = array<i64: 1, 2, 1>, scalar_prefetch = 0 : i64, scratch_operands = 1 : i64, tpu.core_type = #tpu.core_type<tc>, window_params = [{transform_indices = @transform_0, window_bounds = array<i64: 8, 16>}, {transform_indices = @transform_1, window_bounds = array<i64: 16, 128>}, {transform_indices = @transform_2, window_bounds = array<i64: 8, 128>}]} {
    %c0_i32 = arith.constant 0 : i32
    %0 = arith.cmpi eq, %arg2, %c0_i32 : i32
    %1 = arith.extui %0 : i1 to i32
    %c0_i32_0 = arith.constant 0 : i32
    %2 = arith.cmpi ne, %1, %c0_i32_0 : i32
    scf.if %2 {
      %cst_10 = arith.constant 0.000000e+00 : f32
      %12 = vector.broadcast %cst_10 : f32 to vector<8x128xf32>
      %c0_11 = arith.constant 0 : index
      %c0_12 = arith.constant 0 : index
      %13 = vector.load %arg6[%c0_11, %c0_12] : memref<8x128xf32, #tpu.memory_space<vmem>>, vector<8x128xf32>
      tpu.vector_store %arg6[%c0_11, %c0_12], %12 {strides = array<i32>} : memref<8x128xf32, #tpu.memory_space<vmem>>, vector<8x128xf32>,
    } else {
    }
    %c0 = arith.constant 0 : index
    %c0_1 = arith.constant 0 : index
    %3 = vector.load %arg6[%c0, %c0_1] : memref<8x128xf32, #tpu.memory_space<vmem>>, vector<8x128xf32>
    %c0_2 = arith.constant 0 : index
    %c0_3 = arith.constant 0 : index
    %4 = vector.load %arg3[%c0_2, %c0_3] : memref<8x16xf32, #tpu.memory_space<vmem>>, vector<8x16xf32>
    %c0_4 = arith.constant 0 : index
    %c0_5 = arith.constant 0 : index
    %5 = vector.load %arg4[%c0_4, %c0_5] : memref<16x128xf32, #tpu.memory_space<vmem>>, vector<16x128xf32>
    %cst = arith.constant dense<0.000000e+00> : vector<8x128xf32>
    %6 = tpu.matmul %4, %5, %cst {dimension_numbers = #tpu.dot_dimension_numbers<[1], [0], [0], [1], [0, 0, 1, 1], [], []>} : vector<8x16xf32>, vector<16x128xf32>, vector<8x128xf32> -> vector<8x128xf32>
    %7 = arith.addf %3, %6 : vector<8x128xf32>
    %c0_6 = arith.constant 0 : index
    %c0_7 = arith.constant 0 : index
    %8 = vector.load %arg6[%c0_6, %c0_7] : memref<8x128xf32, #tpu.memory_space<vmem>>, vector<8x128xf32>
    tpu.vector_store %arg6[%c0_6, %c0_7], %7 {strides = array<i32>} : memref<8x128xf32, #tpu.memory_space<vmem>>, vector<8x128xf32>,
    %c0_i32_8 = arith.constant 0 : i32
    %9 = arith.cmpi eq, %arg2, %c0_i32_8 : i32
    %10 = arith.extui %9 : i1 to i32
    %c0_i32_9 = arith.constant 0 : i32
    %11 = arith.cmpi ne, %10, %c0_i32_9 : i32
    scf.if %11 {
      %c0_10 = arith.constant 0 : index
      %c0_11 = arith.constant 0 : index
      %12 = vector.load %arg6[%c0_10, %c0_11] : memref<8x128xf32, #tpu.memory_space<vmem>>, vector<8x128xf32>
      %c0_12 = arith.constant 0 : index
      %c0_13 = arith.constant 0 : index
      %13 = vector.load %arg5[%c0_12, %c0_13] : memref<8x128xf32, #tpu.memory_space<vmem>>, vector<8x128xf32>
      tpu.vector_store %arg5[%c0_12, %c0_13], %12 {strides = array<i32>} : memref<8x128xf32, #tpu.memory_space<vmem>>, vector<8x128xf32>,
    } else {
    }
    return
  }
  func.func @transform_0(%arg0: i32, %arg1: i32, %arg2: i32) -> (i32, i32) {
    %c0_i32 = arith.constant 0 : i32
    return %arg0, %arg2 : i32, i32
  }
  func.func @transform_1(%arg0: i32, %arg1: i32, %arg2: i32) -> (i32, i32) {
    %c0_i32 = arith.constant 0 : i32
    return %arg2, %arg1 : i32, i32
  }
  func.func @transform_2(%arg0: i32, %arg1: i32, %arg2: i32) -> (i32, i32) {
    %c0_i32 = arith.constant 0 : i32
    return %arg0, %arg1 : i32, i32
  }
}

module attributes {stable_mosaic.version = 11 : i64} {
  func.func @_matmul_kernel(%arg0: i32, %arg1: i32, %arg2: i32, %arg3: memref<8x16xf32, #tpu.memory_space<vmem>>, %arg4: memref<16x128xf32, #tpu.memory_space<vmem>>, %arg5: memref<8x128xf32, #tpu.memory_space<vmem>>, %arg6: memref<8x128xf32, #tpu.memory_space<vmem>>) attributes {dimension_semantics = [#tpu.dimension_semantics<parallel>, #tpu.dimension_semantics<parallel>, #tpu.dimension_semantics<arbitrary>], iteration_bounds = array<i64: 1, 5, 1>, scalar_prefetch = 0 : i64, scratch_operands = 1 : i64, tpu.core_type = #tpu.core_type<tc>, window_params = [{transform_indices = @transform_0, window_bounds = array<i64: 8, 16>}, {transform_indices = @transform_1, window_bounds = array<i64: 16, 128>}, {transform_indices = @transform_2, window_bounds = array<i64: 8, 128>}]} {
    %c0_i32 = arith.constant 0 : i32
    %0 = arith.cmpi eq, %arg2, %c0_i32 : i32
    %1 = arith.extui %0 : i1 to i32
    %c0_i32_0 = arith.constant 0 : i32
    %2 = arith.cmpi ne, %1, %c0_i32_0 : i32
    scf.if %2 {
      %cst_10 = arith.constant 0.000000e+00 : f32
      %12 = vector.broadcast %cst_10 : f32 to vector<8x128xf32>
      %c0_11 = arith.constant 0 : index
      %c0_12 = arith.constant 0 : index
      %13 = vector.load %arg6[%c0_11, %c0_12] : memref<8x128xf32, #tpu.memory_space<vmem>>, vector<8x128xf32>
      tpu.vector_store %arg6[%c0_11, %c0_12], %12 {strides = array<i32>} : memref<8x128xf32, #tpu.memory_space<vmem>>, vector<8x128xf32>,
    } else {
    }
    %c0 = arith.constant 0 : index
    %c0_1 = arith.constant 0 : index
    %3 = vector.load %arg6[%c0, %c0_1] : memref<8x128xf32, #tpu.memory_space<vmem>>, vector<8x128xf32>
    %c0_2 = arith.constant 0 : index
    %c0_3 = arith.constant 0 : index
    %4 = vector.load %arg3[%c0_2, %c0_3] : memref<8x16xf32, #tpu.memory_space<vmem>>, vector<8x16xf32>
    %c0_4 = arith.constant 0 : index
    %c0_5 = arith.constant 0 : index
    %5 = vector.load %arg4[%c0_4, %c0_5] : memref<16x128xf32, #tpu.memory_space<vmem>>, vector<16x128xf32>
    %cst = arith.constant dense<0.000000e+00> : vector<8x128xf32>
    %6 = tpu.matmul %4, %5, %cst {dimension_numbers = #tpu.dot_dimension_numbers<[1], [0], [0], [1], [0, 0, 1, 1], [], []>} : vector<8x16xf32>, vector<16x128xf32>, vector<8x128xf32> -> vector<8x128xf32>
    %7 = arith.addf %3, %6 : vector<8x128xf32>
    %c0_6 = arith.constant 0 : index
    %c0_7 = arith.constant 0 : index
    %8 = vector.load %arg6[%c0_6, %c0_7] : memref<8x128xf32, #tpu.memory_space<vmem>>, vector<8x128xf32>
    tpu.vector_store %arg6[%c0_6, %c0_7], %7 {strides = array<i32>} : memref<8x128xf32, #tpu.memory_space<vmem>>, vector<8x128xf32>,
    %c0_i32_8 = arith.constant 0 : i32
    %9 = arith.cmpi eq, %arg2, %c0_i32_8 : i32
    %10 = arith.extui %9 : i1 to i32
    %c0_i32_9 = arith.constant 0 : i32
    %11 = arith.cmpi ne, %10, %c0_i32_9 : i32
    scf.if %11 {
      %c0_10 = arith.constant 0 : index
      %c0_11 = arith.constant 0 : index
      %12 = vector.load %arg6[%c0_10, %c0_11] : memref<8x128xf32, #tpu.memory_space<vmem>>, vector<8x128xf32>
      %c0_12 = arith.constant 0 : index
      %c0_13 = arith.constant 0 : index
      %13 = vector.load %arg5[%c0_12, %c0_13] : memref<8x128xf32, #tpu.memory_space<vmem>>, vector<8x128xf32>
      tpu.vector_store %arg5[%c0_12, %c0_13], %12 {strides = array<i32>} : memref<8x128xf32, #tpu.memory_space<vmem>>, vector<8x128xf32>,
    } else {
    }
    return
  }
  func.func @transform_0(%arg0: i32, %arg1: i32, %arg2: i32) -> (i32, i32) {
    %c0_i32 = arith.constant 0 : i32
    return %arg0, %arg2 : i32, i32
  }
  func.func @transform_1(%arg0: i32, %arg1: i32, %arg2: i32) -> (i32, i32) {
    %c0_i32 = arith.constant 0 : i32
    return %arg2, %arg1 : i32, i32
  }
  func.func @transform_2(%arg0: i32, %arg1: i32, %arg2: i32) -> (i32, i32) {
    %c0_i32 = arith.constant 0 : i32
    return %arg0, %arg1 : i32, i32
  }
}

module attributes {stable_mosaic.version = 11 : i64} {
  func.func @_matmul_kernel(%arg0: i32, %arg1: i32, %arg2: i32, %arg3: memref<8x192xf32, #tpu.memory_space<vmem>>, %arg4: memref<192x128xf32, #tpu.memory_space<vmem>>, %arg5: memref<8x128xf32, #tpu.memory_space<vmem>>, %arg6: memref<8x128xf32, #tpu.memory_space<vmem>>) attributes {dimension_semantics = [#tpu.dimension_semantics<parallel>, #tpu.dimension_semantics<parallel>, #tpu.dimension_semantics<arbitrary>], iteration_bounds = array<i64: 1, 5, 1>, scalar_prefetch = 0 : i64, scratch_operands = 1 : i64, tpu.core_type = #tpu.core_type<tc>, window_params = [{transform_indices = @transform_0, window_bounds = array<i64: 8, 192>}, {transform_indices = @transform_1, window_bounds = array<i64: 192, 128>}, {transform_indices = @transform_2, window_bounds = array<i64: 8, 128>}]} {
    %c0_i32 = arith.constant 0 : i32
    %0 = arith.cmpi eq, %arg2, %c0_i32 : i32
    %1 = arith.extui %0 : i1 to i32
    %c0_i32_0 = arith.constant 0 : i32
    %2 = arith.cmpi ne, %1, %c0_i32_0 : i32
    scf.if %2 {
      %cst_10 = arith.constant 0.000000e+00 : f32
      %12 = vector.broadcast %cst_10 : f32 to vector<8x128xf32>
      %c0_11 = arith.constant 0 : index
      %c0_12 = arith.constant 0 : index
      %13 = vector.load %arg6[%c0_11, %c0_12] : memref<8x128xf32, #tpu.memory_space<vmem>>, vector<8x128xf32>
      tpu.vector_store %arg6[%c0_11, %c0_12], %12 {strides = array<i32>} : memref<8x128xf32, #tpu.memory_space<vmem>>, vector<8x128xf32>,
    } else {
    }
    %c0 = arith.constant 0 : index
    %c0_1 = arith.constant 0 : index
    %3 = vector.load %arg6[%c0, %c0_1] : memref<8x128xf32, #tpu.memory_space<vmem>>, vector<8x128xf32>
    %c0_2 = arith.constant 0 : index
    %c0_3 = arith.constant 0 : index
    %4 = vector.load %arg3[%c0_2, %c0_3] : memref<8x192xf32, #tpu.memory_space<vmem>>, vector<8x192xf32>
    %c0_4 = arith.constant 0 : index
    %c0_5 = arith.constant 0 : index
    %5 = vector.load %arg4[%c0_4, %c0_5] : memref<192x128xf32, #tpu.memory_space<vmem>>, vector<192x128xf32>
    %cst = arith.constant dense<0.000000e+00> : vector<8x128xf32>
    %6 = tpu.matmul %4, %5, %cst {dimension_numbers = #tpu.dot_dimension_numbers<[1], [0], [0], [1], [0, 0, 1, 1], [], []>} : vector<8x192xf32>, vector<192x128xf32>, vector<8x128xf32> -> vector<8x128xf32>
    %7 = arith.addf %3, %6 : vector<8x128xf32>
    %c0_6 = arith.constant 0 : index
    %c0_7 = arith.constant 0 : index
    %8 = vector.load %arg6[%c0_6, %c0_7] : memref<8x128xf32, #tpu.memory_space<vmem>>, vector<8x128xf32>
    tpu.vector_store %arg6[%c0_6, %c0_7], %7 {strides = array<i32>} : memref<8x128xf32, #tpu.memory_space<vmem>>, vector<8x128xf32>,
    %c0_i32_8 = arith.constant 0 : i32
    %9 = arith.cmpi eq, %arg2, %c0_i32_8 : i32
    %10 = arith.extui %9 : i1 to i32
    %c0_i32_9 = arith.constant 0 : i32
    %11 = arith.cmpi ne, %10, %c0_i32_9 : i32
    scf.if %11 {
      %c0_10 = arith.constant 0 : index
      %c0_11 = arith.constant 0 : index
      %12 = vector.load %arg6[%c0_10, %c0_11] : memref<8x128xf32, #tpu.memory_space<vmem>>, vector<8x128xf32>
      %c0_12 = arith.constant 0 : index
      %c0_13 = arith.constant 0 : index
      %13 = vector.load %arg5[%c0_12, %c0_13] : memref<8x128xf32, #tpu.memory_space<vmem>>, vector<8x128xf32>
      tpu.vector_store %arg5[%c0_12, %c0_13], %12 {strides = array<i32>} : memref<8x128xf32, #tpu.memory_space<vmem>>, vector<8x128xf32>,
    } else {
    }
    return
  }
  func.func @transform_0(%arg0: i32, %arg1: i32, %arg2: i32) -> (i32, i32) {
    %c0_i32 = arith.constant 0 : i32
    return %arg0, %arg2 : i32, i32
  }
  func.func @transform_1(%arg0: i32, %arg1: i32, %arg2: i32) -> (i32, i32) {
    %c0_i32 = arith.constant 0 : i32
    return %arg2, %arg1 : i32, i32
  }
  func.func @transform_2(%arg0: i32, %arg1: i32, %arg2: i32) -> (i32, i32) {
    %c0_i32 = arith.constant 0 : i32
    return %arg0, %arg1 : i32, i32
  }
}

module attributes {stable_mosaic.version = 11 : i64} {
  func.func @_softmax_all_kernel(%arg0: memref<8x128xf32, #tpu.memory_space<vmem>>, %arg1: memref<8x128xf32, #tpu.memory_space<vmem>>) attributes {dimension_semantics = [], scalar_prefetch = 0 : i64, scratch_operands = 0 : i64, tpu.core_type = #tpu.core_type<tc>} {
    %c0 = arith.constant 0 : index
    %c0_0 = arith.constant 0 : index
    %0 = vector.load %arg0[%c0, %c0_0] : memref<8x128xf32, #tpu.memory_space<vmem>>, vector<8x128xf32>
    %1 = vector.shape_cast %0 : vector<8x128xf32> to vector<1x8x128xf32>
    %cst = arith.constant dense<0xFF800000> : vector<1xf32>
    %2 = vector.multi_reduction <maximumf>, %1, %cst [1, 2] : vector<1x8x128xf32> to vector<1xf32>
    %3 = vector.shape_cast %2 : vector<1xf32> to vector<1x1x1xf32>
    %4 = vector.extract %3[0, 0, 0] : f32 from vector<1x1x1xf32>
    %5 = vector.broadcast %4 : f32 to vector<8x128xf32>
    %6 = arith.subf %0, %5 : vector<8x128xf32>
    %7 = math.exp %6 : vector<8x128xf32>
    %8 = vector.shape_cast %7 : vector<8x128xf32> to vector<1x8x128xf32>
    %cst_1 = arith.constant dense<0.000000e+00> : vector<1xf32>
    %9 = vector.multi_reduction <add>, %8, %cst_1 [1, 2] : vector<1x8x128xf32> to vector<1xf32>
    %10 = vector.shape_cast %9 : vector<1xf32> to vector<1x1x1xf32>
    %11 = vector.extract %10[0, 0, 0] : f32 from vector<1x1x1xf32>
    %12 = vector.broadcast %11 : f32 to vector<1x1xf32>
    %13 = tpu.reciprocal %12 : vector<1x1xf32> -> vector<1x1xf32>
    %14 = vector.broadcast %13 : vector<1x1xf32> to vector<8x128xf32>
    %15 = arith.mulf %7, %14 : vector<8x128xf32>
    %c0_2 = arith.constant 0 : index
    %c0_3 = arith.constant 0 : index
    %16 = vector.load %arg1[%c0_2, %c0_3] : memref<8x128xf32, #tpu.memory_space<vmem>>, vector<8x128xf32>
    tpu.vector_store %arg1[%c0_2, %c0_3], %15 {strides = array<i32>} : memref<8x128xf32, #tpu.memory_space<vmem>>, vector<8x128xf32>,
    return
  }
}

</mosaic_0001>

<llo_original>
// kernel: _forward_impl.4
$region0: #{_forward_impl.4}
  #allocation0 [shape = 'u32[]', space=smem, size = 0x4, offset = 0x4, fixed_abs, tag = 'smem constant byte address 0x4 - core index']
  #allocation1 [shape = 'u32[144,128]{1,0:T(1,128)}', space=vmem, size = 0x12000, scoped, tag = 'internal scratch']
  #allocation2 [shape = 'f32[8,128]{1,0:T(8,128)}', space=vmem, size = 0x1000, scoped, tag = 'scratch operand']
  %s0 = inlined_call_operand.vmem [shape: f32[8,16], index: 0, kind: input, shape index: {}]
  %s1 = inlined_call_operand.vmem [shape: f32[16,640], index: 1, kind: input, shape index: {}]
  %s2 = inlined_call_operand.vmem [shape: f32[8,640], index: 2, kind: output, shape index: {}]
  %s3 = sld [smem:[#allocation0]]
  $region87: #{_forward_impl.4} parent=0
    _
  %s5 = ssub.s32 1, %s3
  %s6 = scalar_select 0, %s5, %s3
  $region1: #{_forward_impl.4} parent=0
    #allocation3 [shape = 'u8[16384]{0}', space=vmem, size = 0x4000, scoped, tag = 'input window, operand 1']
    loop: start=0, step=1, limit=7
    $region2: #{_forward_impl.4} parent=1 // loop_pre_header
      _
    $region3: #{_forward_impl.4} parent=1 // loop_header
      %s8 = sphi 0, %s12
      %p9 = scmp.ge.s32.totalorder %s8, 7
      %s15 = sphi 0, %s34
      %s16 = sphi 0, %s30
      %s17 = sphi 0, %s26
      %s18 = sphi 0, %s15
      %s19 = sphi 0, %s16
      %s20 = sphi 0, %s17
      %s21 = sphi 0, %s18
      %s22 = sphi 0, %s19
      %s23 = sphi 0, %s20
      %s39 = sphi 0, %s41
      %s42 = sphi 0, %s39
      %s43 = sphi 0, %s42
      %s59 = sphi 0, %s43
      %s67 = sphi 0, %s69
      %s70 = sphi 0, %s67
      %s71 = sphi 0, %s70
      %s87 = sphi 0, %s71
      %s95 = sphi 0, %s97
      %s98 = sphi 0, %s95
      %s99 = sphi 0, %s98
      %s115 = sphi 0, %s99
    $region4: #{_forward_impl.4} parent=1 // loop_header_branch
      %11 = sbr.rel (%p9) target = $region8
    $region5: #{_forward_impl.4} parent=1 // loop_body
      %s13 = ssub.s32 %s8, 1
      %s14 = ssub.s32 %s8, 2
      %s24 = sadd.s32 1, %s17
      %p25 = scmp.ge.s32.totalorder %s24, 1
      %s26 = scalar_select %p25, 0, %s24
      %s27 = sadd.s32 1, %s16
      %s28 = scalar_select %p25, %s27, %s16
      %p29 = scmp.ge.s32.totalorder %s28, 5
      %s30 = scalar_select %p29, 0, %s28
      %s31 = sadd.s32 1, %s15
      %s32 = scalar_select %p29, %s31, %s15
      %p33 = scmp.ge.s32.totalorder %s32, 1
      %s34 = scalar_select %p33, 0, %s32
      %s35 = ssub.s32 %s15, %s34
      %s36 = ssub.s32 %s17, %s26
      %s37 = sor.u32 %s35, %s36
      %p38 = scmp.eq.s32.totalorder %s37, 0
      %s40 = sadd.s32 %s39, 1
      %s41 = scalar_select %p38, %s39, %s40
      %p44 = pneg %p38
      %p45 = scmp.eq.s32.totalorder %s8, 4
      %p46 = por %p44, %p45
      %p47 = scmp.ne.s32.totalorder %s39, %s42
      %p48 = scmp.eq.s32.totalorder %s8, 0
      %p49 = por %p47, %p48
      %p50 = scmp.ne.s32.totalorder %s39, %s42
      %p51 = scmp.eq.s32.totalorder %s13, 4
      %p52 = por %p50, %p51
      %p53 = scmp.ne.s32.totalorder %s42, %s43
      %p54 = scmp.eq.s32.totalorder %s13, 0
      %p55 = por %p53, %p54
      %p56 = scmp.ne.s32.totalorder %s42, %s43
      %p57 = scmp.eq.s32.totalorder %s14, 4
      %p58 = por %p56, %p57
      %p60 = scmp.ne.s32.totalorder %s43, %s59
      %p61 = scmp.eq.s32.totalorder %s14, 0
      %p62 = por %p60, %p61
      %s63 = ssub.s32 %s17, %s26
      %s64 = ssub.s32 %s16, %s30
      %s65 = sor.u32 %s63, %s64
      %p66 = scmp.eq.s32.totalorder %s65, 0
      %s68 = sadd.s32 %s67, 1
      %s69 = scalar_select %p66, %s67, %s68
      %p72 = pneg %p66
      %p73 = scmp.eq.s32.totalorder %s8, 4
      %p74 = por %p72, %p73
      %p75 = scmp.ne.s32.totalorder %s67, %s70
      %p76 = scmp.eq.s32.totalorder %s8, 0
      %p77 = por %p75, %p76
      %p78 = scmp.ne.s32.totalorder %s67, %s70
      %p79 = scmp.eq.s32.totalorder %s13, 4
      %p80 = por %p78, %p79
      %p81 = scmp.ne.s32.totalorder %s70, %s71
      %p82 = scmp.eq.s32.totalorder %s13, 0
      %p83 = por %p81, %p82
      %p84 = scmp.ne.s32.totalorder %s70, %s71
      %p85 = scmp.eq.s32.totalorder %s14, 4
      %p86 = por %p84, %p85
      %p88 = scmp.ne.s32.totalorder %s71, %s87
      %p89 = scmp.eq.s32.totalorder %s14, 0
      %p90 = por %p88, %p89
      %s91 = ssub.s32 %s15, %s34
      %s92 = ssub.s32 %s16, %s30
      %s93 = sor.u32 %s91, %s92
      %p94 = scmp.eq.s32.totalorder %s93, 0
      %s96 = sadd.s32 %s95, 1
      %s97 = scalar_select %p94, %s95, %s96
      %p100 = pneg %p94
      %p101 = scmp.eq.s32.totalorder %s8, 4
      %p102 = por %p100, %p101
      %p103 = scmp.ne.s32.totalorder %s95, %s98
      %p104 = scmp.eq.s32.totalorder %s8, 0
      %p105 = por %p103, %p104
      %p106 = scmp.ne.s32.totalorder %s95, %s98
      %p107 = scmp.eq.s32.totalorder %s13, 4
      %p108 = por %p106, %p107
      %p109 = scmp.ne.s32.totalorder %s98, %s99
      %p110 = scmp.eq.s32.totalorder %s13, 0
      %p111 = por %p109, %p110
      %p112 = scmp.ne.s32.totalorder %s98, %s99
      %p113 = scmp.eq.s32.totalorder %s14, 4
      %p114 = por %p112, %p113
      %p116 = scmp.ne.s32.totalorder %s99, %s115
      %p117 = scmp.eq.s32.totalorder %s14, 0
      %p118 = por %p116, %p117
      %p119 = scmp.le.s32.totalorder 1, %s8
      %p120 = scmp.lt.s32.totalorder %s8, 6
      %p121 = pnand %p119, %p120
      %p122 = pneg %p121
      // Predicated region
      $region9: #{_forward_impl.4} parent=5 // pred_check
        _
      $region10: #{_forward_impl.4} parent=5 // pred_check_branch
        %124 = sbr.rel (%p121) target = $region12
      $region11: #{_forward_impl.4} parent=5 // pred_region
        %s125 = ssub.s32 %s8, 1
        // Predicated region
        $region13: #{_forward_impl.4} parent=11 // pred_check
          %p126 = pneg %p55
        $region14: #{_forward_impl.4} parent=11 // pred_check_branch
          %128 = sbr.rel (%p126) target = $region16
        $region15: #{_forward_impl.4} parent=11 // pred_region
          %p129 = scmp.lt.s32.totalorder %s18, 0
          %s130 = scalar_select %p129, %s18, 0
          %p131 = scmp.lt.s32.totalorder %s20, 0
          %s132 = scalar_select %p131, %s20, 0
          %s133 = sadd.s32 %s132, %s130
          %s134 = smul.addr %s133, 8
          %s135 = scalar_lea.vmem %s0, %s134
        $region16: #{_forward_impl.4} parent=11 // pred_fallthru
          _
      $region12: #{_forward_impl.4} parent=5 // pred_fallthru
        _
      %p136 = scmp.lt.s32.totalorder %s8, 5
      // Predicated region
      $region17: #{_forward_impl.4} parent=5 // pred_check
        %p137 = pneg %p136
      $region18: #{_forward_impl.4} parent=5 // pred_check_branch
        %139 = sbr.rel (%p137) target = $region20
      $region19: #{_forward_impl.4} parent=5 // pred_region
        // Predicated region
        $region21: #{_forward_impl.4} parent=19 // pred_check
          %p140 = pneg %p77
        $region22: #{_forward_impl.4} parent=19 // pred_check_branch
          %142 = sbr.rel (%p140) target = $region24
        $region23: #{_forward_impl.4} parent=19 // pred_region
          %s143 = sand.u32 %s67, 1
          %s144 = sand.u32 %s67, 1
          %s145 = smul.addr %s144, 16
          %s146 = scalar_lea.vmem [#allocation3], %s145
          %s147 = smul.u32 2, %s17
          %s148 = smul.addr %s147, 5
          %s149 = sadd.s32 %s16, %s148
          %s150 = smul.addr %s149, 8
          %s151 = scalar_lea.vmem %s1, %s150
          // Predicated region
          $region25: #{_forward_impl.4} parent=23 // pred_check
            _
          $region26: #{_forward_impl.4} parent=23 // pred_check_branch
            %153 = sbr.rel (0) target = $region28
          $region27: #{_forward_impl.4} parent=23 // pred_region
            // Predicated region
            $region29: #{_forward_impl.4} parent=27 // pred_check
              _
            $region30: #{_forward_impl.4} parent=27 // pred_check_branch
              %155 = sbr.rel (0) target = $region32
            $region31: #{_forward_impl.4} parent=27 // pred_region
              // Predicated region
              $region44: #{_forward_impl.4} parent=31 // pred_check
                _
              $region45: #{_forward_impl.4} parent=31 // pred_check_branch
                %173 = sbr.rel (0) target = $region47
              $region46: #{_forward_impl.4} parent=31 // pred_region
                loop: start=0, step=1, limit=1
                $region48: #{_forward_impl.4} parent=46 // loop_pre_header
                  _
                $region49: #{_forward_impl.4} parent=46 // loop_header
                  %s175 = sphi 0, %s179
                  %p176 = scmp.ge.s32.totalorder %s175, 1
                  %s180 = sphi %s151, %s151
                  %s181 = sphi %s146, %s146
                $region50: #{_forward_impl.4} parent=46 // loop_header_branch
                  %178 = sbr.rel (%p176) target = $region54
                $region51: #{_forward_impl.4} parent=46 // loop_body
                  %v182 = vld [vmem:[%s180] sm:$0xff]
                  %183 = vst [vmem:[%s181] sm:$0xff] %v182
                  %v184 = vld [vmem:[%s180 + $0x28] sm:$0xff]
                  %185 = vst [vmem:[%s181 + $0x8] sm:$0xff] %v184
                $region52: #{_forward_impl.4} parent=46 // loop_footer
                  %s179 = sadd.s32 1, %s175
                $region53: #{_forward_impl.4} parent=46 // loop_footer_branch
                  %174 = sbr.rel target = $region49
                $region54: #{_forward_impl.4} parent=46 // loop_exit
                  _
              $region47: #{_forward_impl.4} parent=31 // pred_fallthru
                _
              // Predicated region
              $region55: #{_forward_impl.4} parent=31 // pred_check
                _
              $region56: #{_forward_impl.4} parent=31 // pred_check_branch
                %187 = sbr.rel target = $region58
              $region57: #{_forward_impl.4} parent=31 // pred_region
                _
              $region58: #{_forward_impl.4} parent=31 // pred_fallthru
                _
            $region32: #{_forward_impl.4} parent=27 // pred_fallthru
              _
            // Predicated region
            $region33: #{_forward_impl.4} parent=27 // pred_check
              _
            $region34: #{_forward_impl.4} parent=27 // pred_check_branch
              %157 = sbr.rel target = $region36
            $region35: #{_forward_impl.4} parent=27 // pred_region
              %s159 = ssub.s32 256, 1
              loop: start=0, step=1, limit=1
              $region37: #{_forward_impl.4} parent=35 // loop_pre_header
                _
              $region38: #{_forward_impl.4} parent=35 // loop_header
                %s161 = sphi 0, %s165
                %p162 = scmp.ge.s32.totalorder %s161, 1
                %s166 = sphi %s151, %s151
                %s167 = sphi %s146, %s146
              $region39: #{_forward_impl.4} parent=35 // loop_header_branch
                %164 = sbr.rel (%p162) target = $region43
              $region40: #{_forward_impl.4} parent=35 // loop_body
                %v168 = vld [vmem:[%s166] sm:%s159]
                %169 = vst [vmem:[%s167] sm:%s159] %v168
                %v170 = vld [vmem:[%s166 + $0x28] sm:%s159]
                %171 = vst [vmem:[%s167 + $0x8] sm:%s159] %v170
              $region41: #{_forward_impl.4} parent=35 // loop_footer
                %s165 = sadd.s32 1, %s161
              $region42: #{_forward_impl.4} parent=35 // loop_footer_branch
                %160 = sbr.rel target = $region38
              $region43: #{_forward_impl.4} parent=35 // loop_exit
                _
            $region36: #{_forward_impl.4} parent=27 // pred_fallthru
              _
          $region28: #{_forward_impl.4} parent=23 // pred_fallthru
            _
          %188 = vnop
        $region24: #{_forward_impl.4} parent=19 // pred_fallthru
          _
      $region20: #{_forward_impl.4} parent=5 // pred_fallthru
        _
      %p189 = scmp.le.s32.totalorder 1, %s8
      %p190 = scmp.lt.s32.totalorder %s8, 6
      %p191 = pnand %p189, %p190
      %p192 = pneg %p191
      // Predicated region
      $region59: #{_forward_impl.4} parent=5 // pred_check
        _
      $region60: #{_forward_impl.4} parent=5 // pred_check_branch
        %194 = sbr.rel (%p191) target = $region62
      $region61: #{_forward_impl.4} parent=5 // pred_region
        %s195 = ssub.s32 %s8, 1
        %s196 = sand.u32 %s70, 1
        %s197 = sand.u32 %s70, 1
        %s198 = smul.addr %s197, 16
        %s199 = scalar_lea.vmem [#allocation3], %s198
        // Predicated region
        $region63: #{_forward_impl.4} parent=61 // pred_check
          %p200 = pneg %p83
        $region64: #{_forward_impl.4} parent=61 // pred_check_branch
          %202 = sbr.rel (%p200) target = $region66
        $region65: #{_forward_impl.4} parent=61 // pred_region
          _
        $region66: #{_forward_impl.4} parent=61 // pred_fallthru
          _
        %p203 = scmp.lt.s32.totalorder %s18, 0
        %s204 = scalar_select %p203, %s18, 0
        %p205 = scmp.lt.s32.totalorder %s20, 0
        %s206 = scalar_select %p205, %s20, 0
        %s207 = sadd.s32 %s206, %s204
        %s208 = smul.addr %s207, 8
        %s209 = scalar_lea.vmem %s0, %s208
        %p210 = pneg %p55
        %p211 = pneg %p52
        %s212 = sand.u32 %s70, 1
        %s213 = sand.u32 %s70, 1
        %s214 = smul.addr %s213, 16
        %s215 = scalar_lea.vmem [#allocation3], %s214
        %p216 = pneg %p83
        %p217 = pneg %p80
        %p218 = pneg %p111
        %p219 = pneg %p108
        %p220 = scmp.lt.s32.totalorder %s18, 0
        %s221 = scalar_select %p220, %s18, 0
        %p222 = scmp.lt.s32.totalorder %s19, 4
        %s223 = scalar_select %p222, %s19, 4
        %s224 = smul.addr %s221, 5
        %s225 = sadd.s32 %s223, %s224
        %s226 = smul.addr %s225, 8
        %s227 = scalar_lea.vmem %s2, %s226
        %p228 = scmp.lt.s32.totalorder %s18, 0
        %s229 = scalar_select %p228, %s18, 0
        %p230 = scmp.lt.s32.totalorder %s20, 0
        %s231 = scalar_select %p230, %s20, 0
        %s232 = sadd.s32 %s231, %s229
        %s233 = smul.addr %s232, 8
        %s234 = scalar_lea.vmem %s0, %s233
        %s235 = smul.u32 2, %s20
        %p236 = scmp.lt.s32.totalorder %s18, 0
        %s237 = scalar_select %p236, %s18, 0
        %p238 = scmp.lt.s32.totalorder %s19, 4
        %s239 = scalar_select %p238, %s19, 4
        %s240 = smul.addr %s237, 5
        %s241 = sadd.s32 %s239, %s240
        %s242 = smul.addr %s241, 8
        %s243 = scalar_lea.vmem %s2, %s242
        %p244 = scmp.eq.s32.totalorder %s20, 0
        // Predicated region
        $region67: #{_forward_impl.4} parent=61 // pred_check
          %p245 = pneg %p244
        $region68: #{_forward_impl.4} parent=61 // pred_check_branch
          %247 = sbr.rel (%p245) target = $region70
        $region69: #{_forward_impl.4} parent=61 // pred_region
          %248 = vst [vmem:[#allocation2] sm:$0xff] 0.0
        $region70: #{_forward_impl.4} parent=61 // pred_fallthru
          _
        %v249 = vld [vmem:[#allocation2] sm:$0xff]
        %v250 = vld [vmem:[%s234] sm:$0xff]
        %v251 = vld [vmem:[%s199] sm:$0xff]
        %v252 = vld [vmem:[%s199 + $0x8] sm:$0xff]
        %vm253 = vcmask 130048
        %v255 = vsel %vm253, %v250, 0
        %257 = vmatprep.subr.mxu0 0.0
        %258 = vmatpush1.msra.mxu0 0.0
        %259 = vmatprep.subr.mxu0 0.0
        %260 = vmatpush1.msra.mxu0 0.0
        %261 = vmatprep.subr.mxu0 0.0
        %262 = vmatpush1.msra.mxu0 0.0
        %263 = vmatprep.subr.mxu0 0.0
        %264 = vmatpush1.msra.mxu0 0.0
        %265 = vmatprep.subr.mxu0 0.0
        %266 = vmatpush1.msra.mxu0 0.0
        %267 = vmatprep.subr.mxu0 0.0
        %268 = vmatpush1.msra.mxu0 0.0
        %269 = vmatprep.subr.mxu0 0.0
        %270 = vmatpush1.msra.mxu0 0.0
        %271 = vmatprep.subr.mxu0 0.0
        %272 = vmatpush1.msra.mxu0 0.0
        %273 = vmatprep.subr.mxu0 0.0
        %274 = vmatpush1.msra.mxu0 0.0
        %275 = vmatprep.subr.mxu0 0.0
        %276 = vmatpush1.msra.mxu0 0.0
        %277 = vmatprep.subr.mxu0 0.0
        %278 = vmatpush1.msra.mxu0 0.0
        %279 = vmatprep.subr.mxu0 0.0
        %280 = vmatpush1.msra.mxu0 0.0
        %281 = vmatprep.subr.mxu0 0.0
        %282 = vmatpush1.msra.mxu0 0.0
        %283 = vmatprep.subr.mxu0 0.0
        %284 = vmatpush1.msra.mxu0 0.0
        %285 = vmatprep.subr.mxu0 0.0
        %286 = vmatpush1.msra.mxu0 %v252
        %287 = vmatprep.subr.mxu0 0.0
        %288 = vmatpush1.msra.mxu0 %v251
        %289 = vmatprep.subr.mxu0 0.0
        %290 = vmatpush2.msra.mxu0 0.0
        %291 = vmatprep.subr.mxu0 0.0
        %292 = vmatpush2.msra.mxu0 0.0
        %293 = vmatprep.subr.mxu0 0.0
        %294 = vmatpush2.msra.mxu0 0.0
        %295 = vmatprep.subr.mxu0 0.0
        %296 = vmatpush2.msra.mxu0 0.0
        %297 = vmatprep.subr.mxu0 0.0
        %298 = vmatpush2.msra.mxu0 0.0
        %299 = vmatprep.subr.mxu0 0.0
        %300 = vmatpush2.msra.mxu0 0.0
        %301 = vmatprep.subr.mxu0 0.0
        %302 = vmatpush2.msra.mxu0 0.0
        %303 = vmatprep.subr.mxu0 0.0
        %304 = vmatpush2.msra.mxu0 0.0
        %305 = vmatprep.subr.mxu0 0.0
        %306 = vmatpush2.msra.mxu0 0.0
        %307 = vmatprep.subr.mxu0 0.0
        %308 = vmatpush2.msra.mxu0 0.0
        %309 = vmatprep.subr.mxu0 0.0
        %310 = vmatpush2.msra.mxu0 0.0
        %311 = vmatprep.subr.mxu0 0.0
        %312 = vmatpush2.msra.mxu0 0.0
        %313 = vmatprep.subr.mxu0 0.0
        %314 = vmatpush2.msra.mxu0 0.0
        %315 = vmatprep.subr.mxu0 0.0
        %316 = vmatpush2.msra.mxu0 0.0
        %317 = vmatprep.subr.mxu0 0.0
        %318 = vmatpush2.msra.mxu0 0.0
        %319 = vmatprep.subr.mxu0 0.0
        %320 = vmatpush2.msra.mxu0 0.0
        %321 = vmatprep.mubr.f32.mxu0 0.0
        %322 = vmatmul.mubr.f32.gmra.mxu0 %v255
        %v323 = vpop.f32.mrf.mxu0
        %v324 = vadd.f32 0.0, %v323
        %v325 = vpop.f32.mrf.mxu0
        %326 = vdwg.mxu0
        %v327 = vadd.f32 %v249, %v324
        %328 = vst [vmem:[#allocation2] sm:$0xff] %v327
        // Predicated region
        $region71: #{_forward_impl.4} parent=61 // pred_check
          %p329 = pneg %p244
        $region72: #{_forward_impl.4} parent=61 // pred_check_branch
          %331 = sbr.rel (%p329) target = $region74
        $region73: #{_forward_impl.4} parent=61 // pred_region
          %v332 = vld [vmem:[#allocation2] sm:$0xff]
          %333 = vst [vmem:[%s243] sm:$0xff] %v332
        $region74: #{_forward_impl.4} parent=61 // pred_fallthru
          _
        %p334 = scmp.lt.s32.totalorder %s18, 0
        %s335 = scalar_select %p334, %s18, 0
        %p336 = scmp.lt.s32.totalorder %s19, 4
        %s337 = scalar_select %p336, %s19, 4
        %s338 = smul.addr %s335, 5
        %s339 = sadd.s32 %s337, %s338
        %s340 = smul.addr %s339, 8
        %s341 = scalar_lea.vmem %s2, %s340
        // Predicated region
        $region75: #{_forward_impl.4} parent=61 // pred_check
          %p342 = pneg %p108
        $region76: #{_forward_impl.4} parent=61 // pred_check_branch
          %344 = sbr.rel (%p342) target = $region78
        $region77: #{_forward_impl.4} parent=61 // pred_region
          _
        $region78: #{_forward_impl.4} parent=61 // pred_fallthru
          _
      $region62: #{_forward_impl.4} parent=5 // pred_fallthru
        _
      %p345 = scmp.le.s32.totalorder 2, %s8
      // Predicated region
      $region79: #{_forward_impl.4} parent=5 // pred_check
        %p346 = pneg %p345
      $region80: #{_forward_impl.4} parent=5 // pred_check_branch
        %348 = sbr.rel (%p346) target = $region82
      $region81: #{_forward_impl.4} parent=5 // pred_region
        %s349 = ssub.s32 %s8, 2
        // Predicated region
        $region83: #{_forward_impl.4} parent=81 // pred_check
          %p350 = pneg %p114
        $region84: #{_forward_impl.4} parent=81 // pred_check_branch
          %352 = sbr.rel (%p350) target = $region86
        $region85: #{_forward_impl.4} parent=81 // pred_region
          %p353 = scmp.lt.s32.totalorder %s21, 0
          %s354 = scalar_select %p353, %s21, 0
          %p355 = scmp.lt.s32.totalorder %s22, 4
          %s356 = scalar_select %p355, %s22, 4
          %s357 = smul.addr %s354, 5
          %s358 = sadd.s32 %s356, %s357
          %s359 = smul.addr %s358, 8
          %s360 = scalar_lea.vmem %s2, %s359
        $region86: #{_forward_impl.4} parent=81 // pred_fallthru
          _
      $region82: #{_forward_impl.4} parent=5 // pred_fallthru
        _
    $region6: #{_forward_impl.4} parent=1 // loop_footer
      %s12 = sadd.s32 1, %s8
    $region7: #{_forward_impl.4} parent=1 // loop_footer_branch
      %7 = sbr.rel target = $region3
    $region8: #{_forward_impl.4} parent=1 // loop_exit
      _

// kernel: _forward_impl.5
$region0: #{_forward_impl.5}
  #allocation0 [shape = 'u32[]', space=smem, size = 0x4, offset = 0x4, fixed_abs, tag = 'smem constant byte address 0x4 - core index']
  #allocation1 [shape = 'u32[144,128]{1,0:T(1,128)}', space=vmem, size = 0x12000, scoped, tag = 'internal scratch']
  #allocation2 [shape = 'f32[8,128]{1,0:T(8,128)}', space=vmem, size = 0x1000, scoped, tag = 'scratch operand']
  %s0 = inlined_call_operand.vmem [shape: f32[8,16], index: 0, kind: input, shape index: {}]
  %s1 = inlined_call_operand.vmem [shape: f32[16,256], index: 1, kind: input, shape index: {}]
  %s2 = inlined_call_operand.vmem [shape: f32[8,256], index: 2, kind: output, shape index: {}]
  %s3 = sld [smem:[#allocation0]]
  $region87: #{_forward_impl.5} parent=0
    _
  %s5 = ssub.s32 1, %s3
  %s6 = scalar_select 0, %s5, %s3
  $region1: #{_forward_impl.5} parent=0
    #allocation3 [shape = 'u8[16384]{0}', space=vmem, size = 0x4000, scoped, tag = 'input window, operand 1']
    loop: start=0, step=1, limit=4
    $region2: #{_forward_impl.5} parent=1 // loop_pre_header
      _
    $region3: #{_forward_impl.5} parent=1 // loop_header
      %s8 = sphi 0, %s12
      %p9 = scmp.ge.s32.totalorder %s8, 4
      %s15 = sphi 0, %s34
      %s16 = sphi 0, %s30
      %s17 = sphi 0, %s26
      %s18 = sphi 0, %s15
      %s19 = sphi 0, %s16
      %s20 = sphi 0, %s17
      %s21 = sphi 0, %s18
      %s22 = sphi 0, %s19
      %s23 = sphi 0, %s20
      %s39 = sphi 0, %s41
      %s42 = sphi 0, %s39
      %s43 = sphi 0, %s42
      %s59 = sphi 0, %s43
      %s67 = sphi 0, %s69
      %s70 = sphi 0, %s67
      %s71 = sphi 0, %s70
      %s87 = sphi 0, %s71
      %s95 = sphi 0, %s97
      %s98 = sphi 0, %s95
      %s99 = sphi 0, %s98
      %s115 = sphi 0, %s99
    $region4: #{_forward_impl.5} parent=1 // loop_header_branch
      %11 = sbr.rel (%p9) target = $region8
    $region5: #{_forward_impl.5} parent=1 // loop_body
      %s13 = ssub.s32 %s8, 1
      %s14 = ssub.s32 %s8, 2
      %s24 = sadd.s32 1, %s17
      %p25 = scmp.ge.s32.totalorder %s24, 1
      %s26 = scalar_select %p25, 0, %s24
      %s27 = sadd.s32 1, %s16
      %s28 = scalar_select %p25, %s27, %s16
      %p29 = scmp.ge.s32.totalorder %s28, 2
      %s30 = scalar_select %p29, 0, %s28
      %s31 = sadd.s32 1, %s15
      %s32 = scalar_select %p29, %s31, %s15
      %p33 = scmp.ge.s32.totalorder %s32, 1
      %s34 = scalar_select %p33, 0, %s32
      %s35 = ssub.s32 %s15, %s34
      %s36 = ssub.s32 %s17, %s26
      %s37 = sor.u32 %s35, %s36
      %p38 = scmp.eq.s32.totalorder %s37, 0
      %s40 = sadd.s32 %s39, 1
      %s41 = scalar_select %p38, %s39, %s40
      %p44 = pneg %p38
      %p45 = scmp.eq.s32.totalorder %s8, 1
      %p46 = por %p44, %p45
      %p47 = scmp.ne.s32.totalorder %s39, %s42
      %p48 = scmp.eq.s32.totalorder %s8, 0
      %p49 = por %p47, %p48
      %p50 = scmp.ne.s32.totalorder %s39, %s42
      %p51 = scmp.eq.s32.totalorder %s13, 1
      %p52 = por %p50, %p51
      %p53 = scmp.ne.s32.totalorder %s42, %s43
      %p54 = scmp.eq.s32.totalorder %s13, 0
      %p55 = por %p53, %p54
      %p56 = scmp.ne.s32.totalorder %s42, %s43
      %p57 = scmp.eq.s32.totalorder %s14, 1
      %p58 = por %p56, %p57
      %p60 = scmp.ne.s32.totalorder %s43, %s59
      %p61 = scmp.eq.s32.totalorder %s14, 0
      %p62 = por %p60, %p61
      %s63 = ssub.s32 %s17, %s26
      %s64 = ssub.s32 %s16, %s30
      %s65 = sor.u32 %s63, %s64
      %p66 = scmp.eq.s32.totalorder %s65, 0
      %s68 = sadd.s32 %s67, 1
      %s69 = scalar_select %p66, %s67, %s68
      %p72 = pneg %p66
      %p73 = scmp.eq.s32.totalorder %s8, 1
      %p74 = por %p72, %p73
      %p75 = scmp.ne.s32.totalorder %s67, %s70
      %p76 = scmp.eq.s32.totalorder %s8, 0
      %p77 = por %p75, %p76
      %p78 = scmp.ne.s32.totalorder %s67, %s70
      %p79 = scmp.eq.s32.totalorder %s13, 1
      %p80 = por %p78, %p79
      %p81 = scmp.ne.s32.totalorder %s70, %s71
      %p82 = scmp.eq.s32.totalorder %s13, 0
      %p83 = por %p81, %p82
      %p84 = scmp.ne.s32.totalorder %s70, %s71
      %p85 = scmp.eq.s32.totalorder %s14, 1
      %p86 = por %p84, %p85
      %p88 = scmp.ne.s32.totalorder %s71, %s87
      %p89 = scmp.eq.s32.totalorder %s14, 0
      %p90 = por %p88, %p89
      %s91 = ssub.s32 %s15, %s34
      %s92 = ssub.s32 %s16, %s30
      %s93 = sor.u32 %s91, %s92
      %p94 = scmp.eq.s32.totalorder %s93, 0
      %s96 = sadd.s32 %s95, 1
      %s97 = scalar_select %p94, %s95, %s96
      %p100 = pneg %p94
      %p101 = scmp.eq.s32.totalorder %s8, 1
      %p102 = por %p100, %p101
      %p103 = scmp.ne.s32.totalorder %s95, %s98
      %p104 = scmp.eq.s32.totalorder %s8, 0
      %p105 = por %p103, %p104
      %p106 = scmp.ne.s32.totalorder %s95, %s98
      %p107 = scmp.eq.s32.totalorder %s13, 1
      %p108 = por %p106, %p107
      %p109 = scmp.ne.s32.totalorder %s98, %s99
      %p110 = scmp.eq.s32.totalorder %s13, 0
      %p111 = por %p109, %p110
      %p112 = scmp.ne.s32.totalorder %s98, %s99
      %p113 = scmp.eq.s32.totalorder %s14, 1
      %p114 = por %p112, %p113
      %p116 = scmp.ne.s32.totalorder %s99, %s115
      %p117 = scmp.eq.s32.totalorder %s14, 0
      %p118 = por %p116, %p117
      %p119 = scmp.le.s32.totalorder 1, %s8
      %p120 = scmp.lt.s32.totalorder %s8, 3
      %p121 = pnand %p119, %p120
      %p122 = pneg %p121
      // Predicated region
      $region9: #{_forward_impl.5} parent=5 // pred_check
        _
      $region10: #{_forward_impl.5} parent=5 // pred_check_branch
        %124 = sbr.rel (%p121) target = $region12
      $region11: #{_forward_impl.5} parent=5 // pred_region
        %s125 = ssub.s32 %s8, 1
        // Predicated region
        $region13: #{_forward_impl.5} parent=11 // pred_check
          %p126 = pneg %p55
        $region14: #{_forward_impl.5} parent=11 // pred_check_branch
          %128 = sbr.rel (%p126) target = $region16
        $region15: #{_forward_impl.5} parent=11 // pred_region
          %p129 = scmp.lt.s32.totalorder %s18, 0
          %s130 = scalar_select %p129, %s18, 0
          %p131 = scmp.lt.s32.totalorder %s20, 0
          %s132 = scalar_select %p131, %s20, 0
          %s133 = sadd.s32 %s132, %s130
          %s134 = smul.addr %s133, 8
          %s135 = scalar_lea.vmem %s0, %s134
        $region16: #{_forward_impl.5} parent=11 // pred_fallthru
          _
      $region12: #{_forward_impl.5} parent=5 // pred_fallthru
        _
      %p136 = scmp.lt.s32.totalorder %s8, 2
      // Predicated region
      $region17: #{_forward_impl.5} parent=5 // pred_check
        %p137 = pneg %p136
      $region18: #{_forward_impl.5} parent=5 // pred_check_branch
        %139 = sbr.rel (%p137) target = $region20
      $region19: #{_forward_impl.5} parent=5 // pred_region
        // Predicated region
        $region21: #{_forward_impl.5} parent=19 // pred_check
          %p140 = pneg %p77
        $region22: #{_forward_impl.5} parent=19 // pred_check_branch
          %142 = sbr.rel (%p140) target = $region24
        $region23: #{_forward_impl.5} parent=19 // pred_region
          %s143 = sand.u32 %s67, 1
          %s144 = sand.u32 %s67, 1
          %s145 = smul.addr %s144, 16
          %s146 = scalar_lea.vmem [#allocation3], %s145
          %s147 = smul.u32 2, %s17
          %s148 = smul.addr %s147, 2
          %s149 = sadd.s32 %s16, %s148
          %s150 = smul.addr %s149, 8
          %s151 = scalar_lea.vmem %s1, %s150
          // Predicated region
          $region25: #{_forward_impl.5} parent=23 // pred_check
            _
          $region26: #{_forward_impl.5} parent=23 // pred_check_branch
            %153 = sbr.rel (0) target = $region28
          $region27: #{_forward_impl.5} parent=23 // pred_region
            // Predicated region
            $region29: #{_forward_impl.5} parent=27 // pred_check
              _
            $region30: #{_forward_impl.5} parent=27 // pred_check_branch
              %155 = sbr.rel (0) target = $region32
            $region31: #{_forward_impl.5} parent=27 // pred_region
              // Predicated region
              $region44: #{_forward_impl.5} parent=31 // pred_check
                _
              $region45: #{_forward_impl.5} parent=31 // pred_check_branch
                %173 = sbr.rel (0) target = $region47
              $region46: #{_forward_impl.5} parent=31 // pred_region
                loop: start=0, step=1, limit=1
                $region48: #{_forward_impl.5} parent=46 // loop_pre_header
                  _
                $region49: #{_forward_impl.5} parent=46 // loop_header
                  %s175 = sphi 0, %s179
                  %p176 = scmp.ge.s32.totalorder %s175, 1
                  %s180 = sphi %s151, %s151
                  %s181 = sphi %s146, %s146
                $region50: #{_forward_impl.5} parent=46 // loop_header_branch
                  %178 = sbr.rel (%p176) target = $region54
                $region51: #{_forward_impl.5} parent=46 // loop_body
                  %v182 = vld [vmem:[%s180] sm:$0xff]
                  %183 = vst [vmem:[%s181] sm:$0xff] %v182
                  %v184 = vld [vmem:[%s180 + $0x10] sm:$0xff]
                  %185 = vst [vmem:[%s181 + $0x8] sm:$0xff] %v184
                $region52: #{_forward_impl.5} parent=46 // loop_footer
                  %s179 = sadd.s32 1, %s175
                $region53: #{_forward_impl.5} parent=46 // loop_footer_branch
                  %174 = sbr.rel target = $region49
                $region54: #{_forward_impl.5} parent=46 // loop_exit
                  _
              $region47: #{_forward_impl.5} parent=31 // pred_fallthru
                _
              // Predicated region
              $region55: #{_forward_impl.5} parent=31 // pred_check
                _
              $region56: #{_forward_impl.5} parent=31 // pred_check_branch
                %187 = sbr.rel target = $region58
              $region57: #{_forward_impl.5} parent=31 // pred_region
                _
              $region58: #{_forward_impl.5} parent=31 // pred_fallthru
                _
            $region32: #{_forward_impl.5} parent=27 // pred_fallthru
              _
            // Predicated region
            $region33: #{_forward_impl.5} parent=27 // pred_check
              _
            $region34: #{_forward_impl.5} parent=27 // pred_check_branch
              %157 = sbr.rel target = $region36
            $region35: #{_forward_impl.5} parent=27 // pred_region
              %s159 = ssub.s32 256, 1
              loop: start=0, step=1, limit=1
              $region37: #{_forward_impl.5} parent=35 // loop_pre_header
                _
              $region38: #{_forward_impl.5} parent=35 // loop_header
                %s161 = sphi 0, %s165
                %p162 = scmp.ge.s32.totalorder %s161, 1
                %s166 = sphi %s151, %s151
                %s167 = sphi %s146, %s146
              $region39: #{_forward_impl.5} parent=35 // loop_header_branch
                %164 = sbr.rel (%p162) target = $region43
              $region40: #{_forward_impl.5} parent=35 // loop_body
                %v168 = vld [vmem:[%s166] sm:%s159]
                %169 = vst [vmem:[%s167] sm:%s159] %v168
                %v170 = vld [vmem:[%s166 + $0x10] sm:%s159]
                %171 = vst [vmem:[%s167 + $0x8] sm:%s159] %v170
              $region41: #{_forward_impl.5} parent=35 // loop_footer
                %s165 = sadd.s32 1, %s161
              $region42: #{_forward_impl.5} parent=35 // loop_footer_branch
                %160 = sbr.rel target = $region38
              $region43: #{_forward_impl.5} parent=35 // loop_exit
                _
            $region36: #{_forward_impl.5} parent=27 // pred_fallthru
              _
          $region28: #{_forward_impl.5} parent=23 // pred_fallthru
            _
          %188 = vnop
        $region24: #{_forward_impl.5} parent=19 // pred_fallthru
          _
      $region20: #{_forward_impl.5} parent=5 // pred_fallthru
        _
      %p189 = scmp.le.s32.totalorder 1, %s8
      %p190 = scmp.lt.s32.totalorder %s8, 3
      %p191 = pnand %p189, %p190
      %p192 = pneg %p191
      // Predicated region
      $region59: #{_forward_impl.5} parent=5 // pred_check
        _
      $region60: #{_forward_impl.5} parent=5 // pred_check_branch
        %194 = sbr.rel (%p191) target = $region62
      $region61: #{_forward_impl.5} parent=5 // pred_region
        %s195 = ssub.s32 %s8, 1
        %s196 = sand.u32 %s70, 1
        %s197 = sand.u32 %s70, 1
        %s198 = smul.addr %s197, 16
        %s199 = scalar_lea.vmem [#allocation3], %s198
        // Predicated region
        $region63: #{_forward_impl.5} parent=61 // pred_check
          %p200 = pneg %p83
        $region64: #{_forward_impl.5} parent=61 // pred_check_branch
          %202 = sbr.rel (%p200) target = $region66
        $region65: #{_forward_impl.5} parent=61 // pred_region
          _
        $region66: #{_forward_impl.5} parent=61 // pred_fallthru
          _
        %p203 = scmp.lt.s32.totalorder %s18, 0
        %s204 = scalar_select %p203, %s18, 0
        %p205 = scmp.lt.s32.totalorder %s20, 0
        %s206 = scalar_select %p205, %s20, 0
        %s207 = sadd.s32 %s206, %s204
        %s208 = smul.addr %s207, 8
        %s209 = scalar_lea.vmem %s0, %s208
        %p210 = pneg %p55
        %p211 = pneg %p52
        %s212 = sand.u32 %s70, 1
        %s213 = sand.u32 %s70, 1
        %s214 = smul.addr %s213, 16
        %s215 = scalar_lea.vmem [#allocation3], %s214
        %p216 = pneg %p83
        %p217 = pneg %p80
        %p218 = pneg %p111
        %p219 = pneg %p108
        %p220 = scmp.lt.s32.totalorder %s18, 0
        %s221 = scalar_select %p220, %s18, 0
        %p222 = scmp.lt.s32.totalorder %s19, 1
        %s223 = scalar_select %p222, %s19, 1
        %s224 = smul.addr %s221, 2
        %s225 = sadd.s32 %s223, %s224
        %s226 = smul.addr %s225, 8
        %s227 = scalar_lea.vmem %s2, %s226
        %p228 = scmp.lt.s32.totalorder %s18, 0
        %s229 = scalar_select %p228, %s18, 0
        %p230 = scmp.lt.s32.totalorder %s20, 0
        %s231 = scalar_select %p230, %s20, 0
        %s232 = sadd.s32 %s231, %s229
        %s233 = smul.addr %s232, 8
        %s234 = scalar_lea.vmem %s0, %s233
        %s235 = smul.u32 2, %s20
        %p236 = scmp.lt.s32.totalorder %s18, 0
        %s237 = scalar_select %p236, %s18, 0
        %p238 = scmp.lt.s32.totalorder %s19, 1
        %s239 = scalar_select %p238, %s19, 1
        %s240 = smul.addr %s237, 2
        %s241 = sadd.s32 %s239, %s240
        %s242 = smul.addr %s241, 8
        %s243 = scalar_lea.vmem %s2, %s242
        %p244 = scmp.eq.s32.totalorder %s20, 0
        // Predicated region
        $region67: #{_forward_impl.5} parent=61 // pred_check
          %p245 = pneg %p244
        $region68: #{_forward_impl.5} parent=61 // pred_check_branch
          %247 = sbr.rel (%p245) target = $region70
        $region69: #{_forward_impl.5} parent=61 // pred_region
          %248 = vst [vmem:[#allocation2] sm:$0xff] 0.0
        $region70: #{_forward_impl.5} parent=61 // pred_fallthru
          _
        %v249 = vld [vmem:[#allocation2] sm:$0xff]
        %v250 = vld [vmem:[%s234] sm:$0xff]
        %v251 = vld [vmem:[%s199] sm:$0xff]
        %v252 = vld [vmem:[%s199 + $0x8] sm:$0xff]
        %vm253 = vcmask 130048
        %v255 = vsel %vm253, %v250, 0
        %257 = vmatprep.subr.mxu0 0.0
        %258 = vmatpush1.msra.mxu0 0.0
        %259 = vmatprep.subr.mxu0 0.0
        %260 = vmatpush1.msra.mxu0 0.0
        %261 = vmatprep.subr.mxu0 0.0
        %262 = vmatpush1.msra.mxu0 0.0
        %263 = vmatprep.subr.mxu0 0.0
        %264 = vmatpush1.msra.mxu0 0.0
        %265 = vmatprep.subr.mxu0 0.0
        %266 = vmatpush1.msra.mxu0 0.0
        %267 = vmatprep.subr.mxu0 0.0
        %268 = vmatpush1.msra.mxu0 0.0
        %269 = vmatprep.subr.mxu0 0.0
        %270 = vmatpush1.msra.mxu0 0.0
        %271 = vmatprep.subr.mxu0 0.0
        %272 = vmatpush1.msra.mxu0 0.0
        %273 = vmatprep.subr.mxu0 0.0
        %274 = vmatpush1.msra.mxu0 0.0
        %275 = vmatprep.subr.mxu0 0.0
        %276 = vmatpush1.msra.mxu0 0.0
        %277 = vmatprep.subr.mxu0 0.0
        %278 = vmatpush1.msra.mxu0 0.0
        %279 = vmatprep.subr.mxu0 0.0
        %280 = vmatpush1.msra.mxu0 0.0
        %281 = vmatprep.subr.mxu0 0.0
        %282 = vmatpush1.msra.mxu0 0.0
        %283 = vmatprep.subr.mxu0 0.0
        %284 = vmatpush1.msra.mxu0 0.0
        %285 = vmatprep.subr.mxu0 0.0
        %286 = vmatpush1.msra.mxu0 %v252
        %287 = vmatprep.subr.mxu0 0.0
        %288 = vmatpush1.msra.mxu0 %v251
        %289 = vmatprep.subr.mxu0 0.0
        %290 = vmatpush2.msra.mxu0 0.0
        %291 = vmatprep.subr.mxu0 0.0
        %292 = vmatpush2.msra.mxu0 0.0
        %293 = vmatprep.subr.mxu0 0.0
        %294 = vmatpush2.msra.mxu0 0.0
        %295 = vmatprep.subr.mxu0 0.0
        %296 = vmatpush2.msra.mxu0 0.0
        %297 = vmatprep.subr.mxu0 0.0
        %298 = vmatpush2.msra.mxu0 0.0
        %299 = vmatprep.subr.mxu0 0.0
        %300 = vmatpush2.msra.mxu0 0.0
        %301 = vmatprep.subr.mxu0 0.0
        %302 = vmatpush2.msra.mxu0 0.0
        %303 = vmatprep.subr.mxu0 0.0
        %304 = vmatpush2.msra.mxu0 0.0
        %305 = vmatprep.subr.mxu0 0.0
        %306 = vmatpush2.msra.mxu0 0.0
        %307 = vmatprep.subr.mxu0 0.0
        %308 = vmatpush2.msra.mxu0 0.0
        %309 = vmatprep.subr.mxu0 0.0
        %310 = vmatpush2.msra.mxu0 0.0
        %311 = vmatprep.subr.mxu0 0.0
        %312 = vmatpush2.msra.mxu0 0.0
        %313 = vmatprep.subr.mxu0 0.0
        %314 = vmatpush2.msra.mxu0 0.0
        %315 = vmatprep.subr.mxu0 0.0
        %316 = vmatpush2.msra.mxu0 0.0
        %317 = vmatprep.subr.mxu0 0.0
        %318 = vmatpush2.msra.mxu0 0.0
        %319 = vmatprep.subr.mxu0 0.0
        %320 = vmatpush2.msra.mxu0 0.0
        %321 = vmatprep.mubr.f32.mxu0 0.0
        %322 = vmatmul.mubr.f32.gmra.mxu0 %v255
        %v323 = vpop.f32.mrf.mxu0
        %v324 = vadd.f32 0.0, %v323
        %v325 = vpop.f32.mrf.mxu0
        %326 = vdwg.mxu0
        %v327 = vadd.f32 %v249, %v324
        %328 = vst [vmem:[#allocation2] sm:$0xff] %v327
        // Predicated region
        $region71: #{_forward_impl.5} parent=61 // pred_check
          %p329 = pneg %p244
        $region72: #{_forward_impl.5} parent=61 // pred_check_branch
          %331 = sbr.rel (%p329) target = $region74
        $region73: #{_forward_impl.5} parent=61 // pred_region
          %v332 = vld [vmem:[#allocation2] sm:$0xff]
          %333 = vst [vmem:[%s243] sm:$0xff] %v332
        $region74: #{_forward_impl.5} parent=61 // pred_fallthru
          _
        %p334 = scmp.lt.s32.totalorder %s18, 0
        %s335 = scalar_select %p334, %s18, 0
        %p336 = scmp.lt.s32.totalorder %s19, 1
        %s337 = scalar_select %p336, %s19, 1
        %s338 = smul.addr %s335, 2
        %s339 = sadd.s32 %s337, %s338
        %s340 = smul.addr %s339, 8
        %s341 = scalar_lea.vmem %s2, %s340
        // Predicated region
        $region75: #{_forward_impl.5} parent=61 // pred_check
          %p342 = pneg %p108
        $region76: #{_forward_impl.5} parent=61 // pred_check_branch
          %344 = sbr.rel (%p342) target = $region78
        $region77: #{_forward_impl.5} parent=61 // pred_region
          _
        $region78: #{_forward_impl.5} parent=61 // pred_fallthru
          _
      $region62: #{_forward_impl.5} parent=5 // pred_fallthru
        _
      %p345 = scmp.le.s32.totalorder 2, %s8
      // Predicated region
      $region79: #{_forward_impl.5} parent=5 // pred_check
        %p346 = pneg %p345
      $region80: #{_forward_impl.5} parent=5 // pred_check_branch
        %348 = sbr.rel (%p346) target = $region82
      $region81: #{_forward_impl.5} parent=5 // pred_region
        %s349 = ssub.s32 %s8, 2
        // Predicated region
        $region83: #{_forward_impl.5} parent=81 // pred_check
          %p350 = pneg %p114
        $region84: #{_forward_impl.5} parent=81 // pred_check_branch
          %352 = sbr.rel (%p350) target = $region86
        $region85: #{_forward_impl.5} parent=81 // pred_region
          %p353 = scmp.lt.s32.totalorder %s21, 0
          %s354 = scalar_select %p353, %s21, 0
          %p355 = scmp.lt.s32.totalorder %s22, 1
          %s356 = scalar_select %p355, %s22, 1
          %s357 = smul.addr %s354, 2
          %s358 = sadd.s32 %s356, %s357
          %s359 = smul.addr %s358, 8
          %s360 = scalar_lea.vmem %s2, %s359
        $region86: #{_forward_impl.5} parent=81 // pred_fallthru
          _
      $region82: #{_forward_impl.5} parent=5 // pred_fallthru
        _
    $region6: #{_forward_impl.5} parent=1 // loop_footer
      %s12 = sadd.s32 1, %s8
    $region7: #{_forward_impl.5} parent=1 // loop_footer_branch
      %7 = sbr.rel target = $region3
    $region8: #{_forward_impl.5} parent=1 // loop_exit
      _

// kernel: _forward_impl.6
$region0: #{_forward_impl.6}
  #allocation0 [shape = 'u32[]', space=smem, size = 0x4, offset = 0x4, fixed_abs, tag = 'smem constant byte address 0x4 - core index']
  #allocation1 [shape = 'u32[144,128]{1,0:T(1,128)}', space=vmem, size = 0x12000, scoped, tag = 'internal scratch']
  #allocation2 [shape = 'f32[8,128]{1,0:T(8,128)}', space=vmem, size = 0x1000, scoped, tag = 'scratch operand']
  %s0 = inlined_call_operand.vmem [shape: f32[8,192], index: 0, kind: input, shape index: {}]
  %s1 = inlined_call_operand.vmem [shape: f32[192,640], index: 1, kind: input, shape index: {}]
  %s2 = inlined_call_operand.vmem [shape: f32[8,640], index: 2, kind: output, shape index: {}]
  %s3 = sld [smem:[#allocation0]]
  $region87: #{_forward_impl.6} parent=0
    _
  %s5 = ssub.s32 1, %s3
  %s6 = scalar_select 0, %s5, %s3
  $region1: #{_forward_impl.6} parent=0
    #allocation3 [shape = 'u8[196608]{0}', space=vmem, size = 0x30000, scoped, tag = 'input window, operand 1']
    loop: start=0, step=1, limit=7
    $region2: #{_forward_impl.6} parent=1 // loop_pre_header
      _
    $region3: #{_forward_impl.6} parent=1 // loop_header
      %s8 = sphi 0, %s12
      %p9 = scmp.ge.s32.totalorder %s8, 7
      %s15 = sphi 0, %s34
      %s16 = sphi 0, %s30
      %s17 = sphi 0, %s26
      %s18 = sphi 0, %s15
      %s19 = sphi 0, %s16
      %s20 = sphi 0, %s17
      %s21 = sphi 0, %s18
      %s22 = sphi 0, %s19
      %s23 = sphi 0, %s20
      %s39 = sphi 0, %s41
      %s42 = sphi 0, %s39
      %s43 = sphi 0, %s42
      %s59 = sphi 0, %s43
      %s67 = sphi 0, %s69
      %s70 = sphi 0, %s67
      %s71 = sphi 0, %s70
      %s87 = sphi 0, %s71
      %s95 = sphi 0, %s97
      %s98 = sphi 0, %s95
      %s99 = sphi 0, %s98
      %s115 = sphi 0, %s99
    $region4: #{_forward_impl.6} parent=1 // loop_header_branch
      %11 = sbr.rel (%p9) target = $region8
    $region5: #{_forward_impl.6} parent=1 // loop_body
      %s13 = ssub.s32 %s8, 1
      %s14 = ssub.s32 %s8, 2
      %s24 = sadd.s32 1, %s17
      %p25 = scmp.ge.s32.totalorder %s24, 1
      %s26 = scalar_select %p25, 0, %s24
      %s27 = sadd.s32 1, %s16
      %s28 = scalar_select %p25, %s27, %s16
      %p29 = scmp.ge.s32.totalorder %s28, 5
      %s30 = scalar_select %p29, 0, %s28
      %s31 = sadd.s32 1, %s15
      %s32 = scalar_select %p29, %s31, %s15
      %p33 = scmp.ge.s32.totalorder %s32, 1
      %s34 = scalar_select %p33, 0, %s32
      %s35 = ssub.s32 %s15, %s34
      %s36 = ssub.s32 %s17, %s26
      %s37 = sor.u32 %s35, %s36
      %p38 = scmp.eq.s32.totalorder %s37, 0
      %s40 = sadd.s32 %s39, 1
      %s41 = scalar_select %p38, %s39, %s40
      %p44 = pneg %p38
      %p45 = scmp.eq.s32.totalorder %s8, 4
      %p46 = por %p44, %p45
      %p47 = scmp.ne.s32.totalorder %s39, %s42
      %p48 = scmp.eq.s32.totalorder %s8, 0
      %p49 = por %p47, %p48
      %p50 = scmp.ne.s32.totalorder %s39, %s42
      %p51 = scmp.eq.s32.totalorder %s13, 4
      %p52 = por %p50, %p51
      %p53 = scmp.ne.s32.totalorder %s42, %s43
      %p54 = scmp.eq.s32.totalorder %s13, 0
      %p55 = por %p53, %p54
      %p56 = scmp.ne.s32.totalorder %s42, %s43
      %p57 = scmp.eq.s32.totalorder %s14, 4
      %p58 = por %p56, %p57
      %p60 = scmp.ne.s32.totalorder %s43, %s59
      %p61 = scmp.eq.s32.totalorder %s14, 0
      %p62 = por %p60, %p61
      %s63 = ssub.s32 %s17, %s26
      %s64 = ssub.s32 %s16, %s30
      %s65 = sor.u32 %s63, %s64
      %p66 = scmp.eq.s32.totalorder %s65, 0
      %s68 = sadd.s32 %s67, 1
      %s69 = scalar_select %p66, %s67, %s68
      %p72 = pneg %p66
      %p73 = scmp.eq.s32.totalorder %s8, 4
      %p74 = por %p72, %p73
      %p75 = scmp.ne.s32.totalorder %s67, %s70
      %p76 = scmp.eq.s32.totalorder %s8, 0
      %p77 = por %p75, %p76
      %p78 = scmp.ne.s32.totalorder %s67, %s70
      %p79 = scmp.eq.s32.totalorder %s13, 4
      %p80 = por %p78, %p79
      %p81 = scmp.ne.s32.totalorder %s70, %s71
      %p82 = scmp.eq.s32.totalorder %s13, 0
      %p83 = por %p81, %p82
      %p84 = scmp.ne.s32.totalorder %s70, %s71
      %p85 = scmp.eq.s32.totalorder %s14, 4
      %p86 = por %p84, %p85
      %p88 = scmp.ne.s32.totalorder %s71, %s87
      %p89 = scmp.eq.s32.totalorder %s14, 0
      %p90 = por %p88, %p89
      %s91 = ssub.s32 %s15, %s34
      %s92 = ssub.s32 %s16, %s30
      %s93 = sor.u32 %s91, %s92
      %p94 = scmp.eq.s32.totalorder %s93, 0
      %s96 = sadd.s32 %s95, 1
      %s97 = scalar_select %p94, %s95, %s96
      %p100 = pneg %p94
      %p101 = scmp.eq.s32.totalorder %s8, 4
      %p102 = por %p100, %p101
      %p103 = scmp.ne.s32.totalorder %s95, %s98
      %p104 = scmp.eq.s32.totalorder %s8, 0
      %p105 = por %p103, %p104
      %p106 = scmp.ne.s32.totalorder %s95, %s98
      %p107 = scmp.eq.s32.totalorder %s13, 4
      %p108 = por %p106, %p107
      %p109 = scmp.ne.s32.totalorder %s98, %s99
      %p110 = scmp.eq.s32.totalorder %s13, 0
      %p111 = por %p109, %p110
      %p112 = scmp.ne.s32.totalorder %s98, %s99
      %p113 = scmp.eq.s32.totalorder %s14, 4
      %p114 = por %p112, %p113
      %p116 = scmp.ne.s32.totalorder %s99, %s115
      %p117 = scmp.eq.s32.totalorder %s14, 0
      %p118 = por %p116, %p117
      %p119 = scmp.le.s32.totalorder 1, %s8
      %p120 = scmp.lt.s32.totalorder %s8, 6
      %p121 = pnand %p119, %p120
      %p122 = pneg %p121
      // Predicated region
      $region9: #{_forward_impl.6} parent=5 // pred_check
        _
      $region10: #{_forward_impl.6} parent=5 // pred_check_branch
        %124 = sbr.rel (%p121) target = $region12
      $region11: #{_forward_impl.6} parent=5 // pred_region
        %s125 = ssub.s32 %s8, 1
        // Predicated region
        $region13: #{_forward_impl.6} parent=11 // pred_check
          %p126 = pneg %p55
        $region14: #{_forward_impl.6} parent=11 // pred_check_branch
          %128 = sbr.rel (%p126) target = $region16
        $region15: #{_forward_impl.6} parent=11 // pred_region
          %s129 = smul.u32 2, %s20
          %p130 = scmp.lt.s32.totalorder %s18, 0
          %s131 = scalar_select %p130, %s18, 0
          %p132 = scmp.lt.s32.totalorder %s129, 1
          %s133 = scalar_select %p132, %s129, 1
          %s134 = smul.addr %s131, 2
          %s135 = sadd.s32 %s133, %s134
          %s136 = smul.addr %s135, 8
          %s137 = scalar_lea.vmem %s0, %s136
          %s138 = smul.u32 2, %s20
        $region16: #{_forward_impl.6} parent=11 // pred_fallthru
          _
      $region12: #{_forward_impl.6} parent=5 // pred_fallthru
        _
      %p139 = scmp.lt.s32.totalorder %s8, 5
      // Predicated region
      $region17: #{_forward_impl.6} parent=5 // pred_check
        %p140 = pneg %p139
      $region18: #{_forward_impl.6} parent=5 // pred_check_branch
        %142 = sbr.rel (%p140) target = $region20
      $region19: #{_forward_impl.6} parent=5 // pred_region
        // Predicated region
        $region21: #{_forward_impl.6} parent=19 // pred_check
          %p143 = pneg %p77
        $region22: #{_forward_impl.6} parent=19 // pred_check_branch
          %145 = sbr.rel (%p143) target = $region24
        $region23: #{_forward_impl.6} parent=19 // pred_region
          %s146 = sand.u32 %s67, 1
          %s147 = sand.u32 %s67, 1
          %s148 = smul.addr %s147, 192
          %s149 = scalar_lea.vmem [#allocation3], %s148
          %s150 = smul.u32 24, %s17
          %s151 = smul.addr %s150, 5
          %s152 = sadd.s32 %s16, %s151
          %s153 = smul.addr %s152, 8
          %s154 = scalar_lea.vmem %s1, %s153
          // Predicated region
          $region25: #{_forward_impl.6} parent=23 // pred_check
            _
          $region26: #{_forward_impl.6} parent=23 // pred_check_branch
            %156 = sbr.rel (0) target = $region28
          $region27: #{_forward_impl.6} parent=23 // pred_region
            // Predicated region
            $region29: #{_forward_impl.6} parent=27 // pred_check
              _
            $region30: #{_forward_impl.6} parent=27 // pred_check_branch
              %158 = sbr.rel (0) target = $region32
            $region31: #{_forward_impl.6} parent=27 // pred_region
              // Predicated region
              $region44: #{_forward_impl.6} parent=31 // pred_check
                _
              $region45: #{_forward_impl.6} parent=31 // pred_check_branch
                %220 = sbr.rel (0) target = $region47
              $region46: #{_forward_impl.6} parent=31 // pred_region
                loop: start=0, step=1, limit=1
                $region48: #{_forward_impl.6} parent=46 // loop_pre_header
                  _
                $region49: #{_forward_impl.6} parent=46 // loop_header
                  %s222 = sphi 0, %s226
                  %p223 = scmp.ge.s32.totalorder %s222, 1
                  %s227 = sphi %s154, %s154
                  %s228 = sphi %s149, %s149
                $region50: #{_forward_impl.6} parent=46 // loop_header_branch
                  %225 = sbr.rel (%p223) target = $region54
                $region51: #{_forward_impl.6} parent=46 // loop_body
                  %v229 = vld [vmem:[%s227] sm:$0xff]
                  %230 = vst [vmem:[%s228] sm:$0xff] %v229
                  %v231 = vld [vmem:[%s227 + $0x28] sm:$0xff]
                  %232 = vst [vmem:[%s228 + $0x8] sm:$0xff] %v231
                  %v233 = vld [vmem:[%s227 + $0x50] sm:$0xff]
                  %234 = vst [vmem:[%s228 + $0x10] sm:$0xff] %v233
                  %v235 = vld [vmem:[%s227 + $0x78] sm:$0xff]
                  %236 = vst [vmem:[%s228 + $0x18] sm:$0xff] %v235
                  %v237 = vld [vmem:[%s227 + $0xa0] sm:$0xff]
                  %238 = vst [vmem:[%s228 + $0x20] sm:$0xff] %v237
                  %v239 = vld [vmem:[%s227 + $0xc8] sm:$0xff]
                  %240 = vst [vmem:[%s228 + $0x28] sm:$0xff] %v239
                  %v241 = vld [vmem:[%s227 + $0xf0] sm:$0xff]
                  %242 = vst [vmem:[%s228 + $0x30] sm:$0xff] %v241
                  %v243 = vld [vmem:[%s227 + $0x118] sm:$0xff]
                  %244 = vst [vmem:[%s228 + $0x38] sm:$0xff] %v243
                  %v245 = vld [vmem:[%s227 + $0x140] sm:$0xff]
                  %246 = vst [vmem:[%s228 + $0x40] sm:$0xff] %v245
                  %v247 = vld [vmem:[%s227 + $0x168] sm:$0xff]
                  %248 = vst [vmem:[%s228 + $0x48] sm:$0xff] %v247
                  %v249 = vld [vmem:[%s227 + $0x190] sm:$0xff]
                  %250 = vst [vmem:[%s228 + $0x50] sm:$0xff] %v249
                  %v251 = vld [vmem:[%s227 + $0x1b8] sm:$0xff]
                  %252 = vst [vmem:[%s228 + $0x58] sm:$0xff] %v251
                  %v253 = vld [vmem:[%s227 + $0x1e0] sm:$0xff]
                  %254 = vst [vmem:[%s228 + $0x60] sm:$0xff] %v253
                  %v255 = vld [vmem:[%s227 + $0x208] sm:$0xff]
                  %256 = vst [vmem:[%s228 + $0x68] sm:$0xff] %v255
                  %v257 = vld [vmem:[%s227 + $0x230] sm:$0xff]
                  %258 = vst [vmem:[%s228 + $0x70] sm:$0xff] %v257
                  %v259 = vld [vmem:[%s227 + $0x258] sm:$0xff]
                  %260 = vst [vmem:[%s228 + $0x78] sm:$0xff] %v259
                  %v261 = vld [vmem:[%s227 + $0x280] sm:$0xff]
                  %262 = vst [vmem:[%s228 + $0x80] sm:$0xff] %v261
                  %v263 = vld [vmem:[%s227 + $0x2a8] sm:$0xff]
                  %264 = vst [vmem:[%s228 + $0x88] sm:$0xff] %v263
                  %v265 = vld [vmem:[%s227 + $0x2d0] sm:$0xff]
                  %266 = vst [vmem:[%s228 + $0x90] sm:$0xff] %v265
                  %v267 = vld [vmem:[%s227 + $0x2f8] sm:$0xff]
                  %268 = vst [vmem:[%s228 + $0x98] sm:$0xff] %v267
                  %v269 = vld [vmem:[%s227 + $0x320] sm:$0xff]
                  %270 = vst [vmem:[%s228 + $0xa0] sm:$0xff] %v269
                  %v271 = vld [vmem:[%s227 + $0x348] sm:$0xff]
                  %272 = vst [vmem:[%s228 + $0xa8] sm:$0xff] %v271
                  %v273 = vld [vmem:[%s227 + $0x370] sm:$0xff]
                  %274 = vst [vmem:[%s228 + $0xb0] sm:$0xff] %v273
                  %v275 = vld [vmem:[%s227 + $0x398] sm:$0xff]
                  %276 = vst [vmem:[%s228 + $0xb8] sm:$0xff] %v275
                $region52: #{_forward_impl.6} parent=46 // loop_footer
                  %s226 = sadd.s32 1, %s222
                $region53: #{_forward_impl.6} parent=46 // loop_footer_branch
                  %221 = sbr.rel target = $region49
                $region54: #{_forward_impl.6} parent=46 // loop_exit
                  _
              $region47: #{_forward_impl.6} parent=31 // pred_fallthru
                _
              // Predicated region
              $region55: #{_forward_impl.6} parent=31 // pred_check
                _
              $region56: #{_forward_impl.6} parent=31 // pred_check_branch
                %278 = sbr.rel target = $region58
              $region57: #{_forward_impl.6} parent=31 // pred_region
                _
              $region58: #{_forward_impl.6} parent=31 // pred_fallthru
                _
            $region32: #{_forward_impl.6} parent=27 // pred_fallthru
              _
            // Predicated region
            $region33: #{_forward_impl.6} parent=27 // pred_check
              _
            $region34: #{_forward_impl.6} parent=27 // pred_check_branch
              %160 = sbr.rel target = $region36
            $region35: #{_forward_impl.6} parent=27 // pred_region
              %s162 = ssub.s32 256, 1
              loop: start=0, step=1, limit=1
              $region37: #{_forward_impl.6} parent=35 // loop_pre_header
                _
              $region38: #{_forward_impl.6} parent=35 // loop_header
                %s164 = sphi 0, %s168
                %p165 = scmp.ge.s32.totalorder %s164, 1
                %s169 = sphi %s154, %s154
                %s170 = sphi %s149, %s149
              $region39: #{_forward_impl.6} parent=35 // loop_header_branch
                %167 = sbr.rel (%p165) target = $region43
              $region40: #{_forward_impl.6} parent=35 // loop_body
                %v171 = vld [vmem:[%s169] sm:%s162]
                %172 = vst [vmem:[%s170] sm:%s162] %v171
                %v173 = vld [vmem:[%s169 + $0x28] sm:%s162]
                %174 = vst [vmem:[%s170 + $0x8] sm:%s162] %v173
                %v175 = vld [vmem:[%s169 + $0x50] sm:%s162]
                %176 = vst [vmem:[%s170 + $0x10] sm:%s162] %v175
                %v177 = vld [vmem:[%s169 + $0x78] sm:%s162]
                %178 = vst [vmem:[%s170 + $0x18] sm:%s162] %v177
                %v179 = vld [vmem:[%s169 + $0xa0] sm:%s162]
                %180 = vst [vmem:[%s170 + $0x20] sm:%s162] %v179
                %v181 = vld [vmem:[%s169 + $0xc8] sm:%s162]
                %182 = vst [vmem:[%s170 + $0x28] sm:%s162] %v181
                %v183 = vld [vmem:[%s169 + $0xf0] sm:%s162]
                %184 = vst [vmem:[%s170 + $0x30] sm:%s162] %v183
                %v185 = vld [vmem:[%s169 + $0x118] sm:%s162]
                %186 = vst [vmem:[%s170 + $0x38] sm:%s162] %v185
                %v187 = vld [vmem:[%s169 + $0x140] sm:%s162]
                %188 = vst [vmem:[%s170 + $0x40] sm:%s162] %v187
                %v189 = vld [vmem:[%s169 + $0x168] sm:%s162]
                %190 = vst [vmem:[%s170 + $0x48] sm:%s162] %v189
                %v191 = vld [vmem:[%s169 + $0x190] sm:%s162]
                %192 = vst [vmem:[%s170 + $0x50] sm:%s162] %v191
                %v193 = vld [vmem:[%s169 + $0x1b8] sm:%s162]
                %194 = vst [vmem:[%s170 + $0x58] sm:%s162] %v193
                %v195 = vld [vmem:[%s169 + $0x1e0] sm:%s162]
                %196 = vst [vmem:[%s170 + $0x60] sm:%s162] %v195
                %v197 = vld [vmem:[%s169 + $0x208] sm:%s162]
                %198 = vst [vmem:[%s170 + $0x68] sm:%s162] %v197
                %v199 = vld [vmem:[%s169 + $0x230] sm:%s162]
                %200 = vst [vmem:[%s170 + $0x70] sm:%s162] %v199
                %v201 = vld [vmem:[%s169 + $0x258] sm:%s162]
                %202 = vst [vmem:[%s170 + $0x78] sm:%s162] %v201
                %v203 = vld [vmem:[%s169 + $0x280] sm:%s162]
                %204 = vst [vmem:[%s170 + $0x80] sm:%s162] %v203
                %v205 = vld [vmem:[%s169 + $0x2a8] sm:%s162]
                %206 = vst [vmem:[%s170 + $0x88] sm:%s162] %v205
                %v207 = vld [vmem:[%s169 + $0x2d0] sm:%s162]
                %208 = vst [vmem:[%s170 + $0x90] sm:%s162] %v207
                %v209 = vld [vmem:[%s169 + $0x2f8] sm:%s162]
                %210 = vst [vmem:[%s170 + $0x98] sm:%s162] %v209
                %v211 = vld [vmem:[%s169 + $0x320] sm:%s162]
                %212 = vst [vmem:[%s170 + $0xa0] sm:%s162] %v211
                %v213 = vld [vmem:[%s169 + $0x348] sm:%s162]
                %214 = vst [vmem:[%s170 + $0xa8] sm:%s162] %v213
                %v215 = vld [vmem:[%s169 + $0x370] sm:%s162]
                %216 = vst [vmem:[%s170 + $0xb0] sm:%s162] %v215
                %v217 = vld [vmem:[%s169 + $0x398] sm:%s162]
                %218 = vst [vmem:[%s170 + $0xb8] sm:%s162] %v217
              $region41: #{_forward_impl.6} parent=35 // loop_footer
                %s168 = sadd.s32 1, %s164
              $region42: #{_forward_impl.6} parent=35 // loop_footer_branch
                %163 = sbr.rel target = $region38
              $region43: #{_forward_impl.6} parent=35 // loop_exit
                _
            $region36: #{_forward_impl.6} parent=27 // pred_fallthru
              _
          $region28: #{_forward_impl.6} parent=23 // pred_fallthru
            _
          %279 = vnop
        $region24: #{_forward_impl.6} parent=19 // pred_fallthru
          _
      $region20: #{_forward_impl.6} parent=5 // pred_fallthru
        _
      %p280 = scmp.le.s32.totalorder 1, %s8
      %p281 = scmp.lt.s32.totalorder %s8, 6
      %p282 = pnand %p280, %p281
      %p283 = pneg %p282
      // Predicated region
      $region59: #{_forward_impl.6} parent=5 // pred_check
        _
      $region60: #{_forward_impl.6} parent=5 // pred_check_branch
        %285 = sbr.rel (%p282) target = $region62
      $region61: #{_forward_impl.6} parent=5 // pred_region
        %s286 = ssub.s32 %s8, 1
        %s287 = sand.u32 %s70, 1
        %s288 = sand.u32 %s70, 1
        %s289 = smul.addr %s288, 192
        %s290 = scalar_lea.vmem [#allocation3], %s289
        // Predicated region
        $region63: #{_forward_impl.6} parent=61 // pred_check
          %p291 = pneg %p83
        $region64: #{_forward_impl.6} parent=61 // pred_check_branch
          %293 = sbr.rel (%p291) target = $region66
        $region65: #{_forward_impl.6} parent=61 // pred_region
          _
        $region66: #{_forward_impl.6} parent=61 // pred_fallthru
          _
        %s294 = smul.u32 2, %s20
        %p295 = scmp.lt.s32.totalorder %s18, 0
        %s296 = scalar_select %p295, %s18, 0
        %p297 = scmp.lt.s32.totalorder %s294, 1
        %s298 = scalar_select %p297, %s294, 1
        %s299 = smul.addr %s296, 2
        %s300 = sadd.s32 %s298, %s299
        %s301 = smul.addr %s300, 8
        %s302 = scalar_lea.vmem %s0, %s301
        %p303 = pneg %p55
        %p304 = pneg %p52
        %s305 = sand.u32 %s70, 1
        %s306 = sand.u32 %s70, 1
        %s307 = smul.addr %s306, 192
        %s308 = scalar_lea.vmem [#allocation3], %s307
        %p309 = pneg %p83
        %p310 = pneg %p80
        %p311 = pneg %p111
        %p312 = pneg %p108
        %p313 = scmp.lt.s32.totalorder %s18, 0
        %s314 = scalar_select %p313, %s18, 0
        %p315 = scmp.lt.s32.totalorder %s19, 4
        %s316 = scalar_select %p315, %s19, 4
        %s317 = smul.addr %s314, 5
        %s318 = sadd.s32 %s316, %s317
        %s319 = smul.addr %s318, 8
        %s320 = scalar_lea.vmem %s2, %s319
        %s321 = smul.u32 2, %s20
        %p322 = scmp.lt.s32.totalorder %s18, 0
        %s323 = scalar_select %p322, %s18, 0
        %p324 = scmp.lt.s32.totalorder %s321, 1
        %s325 = scalar_select %p324, %s321, 1
        %s326 = smul.addr %s323, 2
        %s327 = sadd.s32 %s325, %s326
        %s328 = smul.addr %s327, 8
        %s329 = scalar_lea.vmem %s0, %s328
        %s330 = smul.u32 2, %s20
        %s331 = smul.u32 24, %s20
        %p332 = scmp.lt.s32.totalorder %s18, 0
        %s333 = scalar_select %p332, %s18, 0
        %p334 = scmp.lt.s32.totalorder %s19, 4
        %s335 = scalar_select %p334, %s19, 4
        %s336 = smul.addr %s333, 5
        %s337 = sadd.s32 %s335, %s336
        %s338 = smul.addr %s337, 8
        %s339 = scalar_lea.vmem %s2, %s338
        %p340 = scmp.eq.s32.totalorder %s20, 0
        // Predicated region
        $region67: #{_forward_impl.6} parent=61 // pred_check
          %p341 = pneg %p340
        $region68: #{_forward_impl.6} parent=61 // pred_check_branch
          %343 = sbr.rel (%p341) target = $region70
        $region69: #{_forward_impl.6} parent=61 // pred_region
          %344 = vst [vmem:[#allocation2] sm:$0xff] 0.0
        $region70: #{_forward_impl.6} parent=61 // pred_fallthru
          _
        %v345 = vld [vmem:[#allocation2] sm:$0xff]
        %v346 = vld [vmem:[%s329] sm:$0xff]
        %v347 = vld [vmem:[%s329 + $0x8] sm:$0xff]
        %v348 = vld [vmem:[%s290] sm:$0xff]
        %v349 = vld [vmem:[%s290 + $0x8] sm:$0xff]
        %v350 = vld [vmem:[%s290 + $0x10] sm:$0xff]
        %v351 = vld [vmem:[%s290 + $0x18] sm:$0xff]
        %v352 = vld [vmem:[%s290 + $0x20] sm:$0xff]
        %v353 = vld [vmem:[%s290 + $0x28] sm:$0xff]
        %v354 = vld [vmem:[%s290 + $0x30] sm:$0xff]
        %v355 = vld [vmem:[%s290 + $0x38] sm:$0xff]
        %v356 = vld [vmem:[%s290 + $0x40] sm:$0xff]
        %v357 = vld [vmem:[%s290 + $0x48] sm:$0xff]
        %v358 = vld [vmem:[%s290 + $0x50] sm:$0xff]
        %v359 = vld [vmem:[%s290 + $0x58] sm:$0xff]
        %v360 = vld [vmem:[%s290 + $0x60] sm:$0xff]
        %v361 = vld [vmem:[%s290 + $0x68] sm:$0xff]
        %v362 = vld [vmem:[%s290 + $0x70] sm:$0xff]
        %v363 = vld [vmem:[%s290 + $0x78] sm:$0xff]
        %v364 = vld [vmem:[%s290 + $0x80] sm:$0xff]
        %v365 = vld [vmem:[%s290 + $0x88] sm:$0xff]
        %v366 = vld [vmem:[%s290 + $0x90] sm:$0xff]
        %v367 = vld [vmem:[%s290 + $0x98] sm:$0xff]
        %v368 = vld [vmem:[%s290 + $0xa0] sm:$0xff]
        %v369 = vld [vmem:[%s290 + $0xa8] sm:$0xff]
        %v370 = vld [vmem:[%s290 + $0xb0] sm:$0xff]
        %v371 = vld [vmem:[%s290 + $0xb8] sm:$0xff]
        %vm372 = vcmask 523264
        %v374 = vsel %vm372, %v347, 0
        %376 = vmatprep.subr.mxu0 0.0
        %377 = vmatpush1.msra.mxu0 %v363
        %378 = vmatprep.subr.mxu0 0.0
        %379 = vmatpush1.msra.mxu0 %v362
        %380 = vmatprep.subr.mxu0 0.0
        %381 = vmatpush1.msra.mxu0 %v361
        %382 = vmatprep.subr.mxu0 0.0
        %383 = vmatpush1.msra.mxu0 %v360
        %384 = vmatprep.subr.mxu0 0.0
        %385 = vmatpush1.msra.mxu0 %v359
        %386 = vmatprep.subr.mxu0 0.0
        %387 = vmatpush1.msra.mxu0 %v358
        %388 = vmatprep.subr.mxu0 0.0
        %389 = vmatpush1.msra.mxu0 %v357
        %390 = vmatprep.subr.mxu0 0.0
        %391 = vmatpush1.msra.mxu0 %v356
        %392 = vmatprep.subr.mxu0 0.0
        %393 = vmatpush1.msra.mxu0 %v355
        %394 = vmatprep.subr.mxu0 0.0
        %395 = vmatpush1.msra.mxu0 %v354
        %396 = vmatprep.subr.mxu0 0.0
        %397 = vmatpush1.msra.mxu0 %v353
        %398 = vmatprep.subr.mxu0 0.0
        %399 = vmatpush1.msra.mxu0 %v352
        %400 = vmatprep.subr.mxu0 0.0
        %401 = vmatpush1.msra.mxu0 %v351
        %402 = vmatprep.subr.mxu0 0.0
        %403 = vmatpush1.msra.mxu0 %v350
        %404 = vmatprep.subr.mxu0 0.0
        %405 = vmatpush1.msra.mxu0 %v349
        %406 = vmatprep.subr.mxu0 0.0
        %407 = vmatpush1.msra.mxu0 %v348
        %408 = vmatprep.subr.mxu0 0.0
        %409 = vmatpush2.msra.mxu0 0.0
        %410 = vmatprep.subr.mxu0 0.0
        %411 = vmatpush2.msra.mxu0 0.0
        %412 = vmatprep.subr.mxu0 0.0
        %413 = vmatpush2.msra.mxu0 0.0
        %414 = vmatprep.subr.mxu0 0.0
        %415 = vmatpush2.msra.mxu0 0.0
        %416 = vmatprep.subr.mxu0 0.0
        %417 = vmatpush2.msra.mxu0 0.0
        %418 = vmatprep.subr.mxu0 0.0
        %419 = vmatpush2.msra.mxu0 0.0
        %420 = vmatprep.subr.mxu0 0.0
        %421 = vmatpush2.msra.mxu0 0.0
        %422 = vmatprep.subr.mxu0 0.0
        %423 = vmatpush2.msra.mxu0 0.0
        %424 = vmatprep.subr.mxu0 0.0
        %425 = vmatpush2.msra.mxu0 %v371
        %426 = vmatprep.subr.mxu0 0.0
        %427 = vmatpush2.msra.mxu0 %v370
        %428 = vmatprep.subr.mxu0 0.0
        %429 = vmatpush2.msra.mxu0 %v369
        %430 = vmatprep.subr.mxu0 0.0
        %431 = vmatpush2.msra.mxu0 %v368
        %432 = vmatprep.subr.mxu0 0.0
        %433 = vmatpush2.msra.mxu0 %v367
        %434 = vmatprep.subr.mxu0 0.0
        %435 = vmatpush2.msra.mxu0 %v366
        %436 = vmatprep.subr.mxu0 0.0
        %437 = vmatpush2.msra.mxu0 %v365
        %438 = vmatprep.subr.mxu0 0.0
        %439 = vmatpush2.msra.mxu0 %v364
        %440 = vmatprep.mubr.f32.mxu0 %v374
        %441 = vmatmul.mubr.f32.gmra.mxu0 %v346
        %v442 = vpop.f32.mrf.mxu0
        %v443 = vadd.f32 0.0, %v442
        %v444 = vpop.f32.mrf.mxu0
        %445 = vdwg.mxu0
        %v446 = vadd.f32 %v345, %v443
        %447 = vst [vmem:[#allocation2] sm:$0xff] %v446
        // Predicated region
        $region71: #{_forward_impl.6} parent=61 // pred_check
          %p448 = pneg %p340
        $region72: #{_forward_impl.6} parent=61 // pred_check_branch
          %450 = sbr.rel (%p448) target = $region74
        $region73: #{_forward_impl.6} parent=61 // pred_region
          %v451 = vld [vmem:[#allocation2] sm:$0xff]
          %452 = vst [vmem:[%s339] sm:$0xff] %v451
        $region74: #{_forward_impl.6} parent=61 // pred_fallthru
          _
        %p453 = scmp.lt.s32.totalorder %s18, 0
        %s454 = scalar_select %p453, %s18, 0
        %p455 = scmp.lt.s32.totalorder %s19, 4
        %s456 = scalar_select %p455, %s19, 4
        %s457 = smul.addr %s454, 5
        %s458 = sadd.s32 %s456, %s457
        %s459 = smul.addr %s458, 8
        %s460 = scalar_lea.vmem %s2, %s459
        // Predicated region
        $region75: #{_forward_impl.6} parent=61 // pred_check
          %p461 = pneg %p108
        $region76: #{_forward_impl.6} parent=61 // pred_check_branch
          %463 = sbr.rel (%p461) target = $region78
        $region77: #{_forward_impl.6} parent=61 // pred_region
          _
        $region78: #{_forward_impl.6} parent=61 // pred_fallthru
          _
      $region62: #{_forward_impl.6} parent=5 // pred_fallthru
        _
      %p464 = scmp.le.s32.totalorder 2, %s8
      // Predicated region
      $region79: #{_forward_impl.6} parent=5 // pred_check
        %p465 = pneg %p464
      $region80: #{_forward_impl.6} parent=5 // pred_check_branch
        %467 = sbr.rel (%p465) target = $region82
      $region81: #{_forward_impl.6} parent=5 // pred_region
        %s468 = ssub.s32 %s8, 2
        // Predicated region
        $region83: #{_forward_impl.6} parent=81 // pred_check
          %p469 = pneg %p114
        $region84: #{_forward_impl.6} parent=81 // pred_check_branch
          %471 = sbr.rel (%p469) target = $region86
        $region85: #{_forward_impl.6} parent=81 // pred_region
          %p472 = scmp.lt.s32.totalorder %s21, 0
          %s473 = scalar_select %p472, %s21, 0
          %p474 = scmp.lt.s32.totalorder %s22, 4
          %s475 = scalar_select %p474, %s22, 4
          %s476 = smul.addr %s473, 5
          %s477 = sadd.s32 %s475, %s476
          %s478 = smul.addr %s477, 8
          %s479 = scalar_lea.vmem %s2, %s478
        $region86: #{_forward_impl.6} parent=81 // pred_fallthru
          _
      $region82: #{_forward_impl.6} parent=5 // pred_fallthru
        _
    $region6: #{_forward_impl.6} parent=1 // loop_footer
      %s12 = sadd.s32 1, %s8
    $region7: #{_forward_impl.6} parent=1 // loop_footer_branch
      %7 = sbr.rel target = $region3
    $region8: #{_forward_impl.6} parent=1 // loop_exit
      _

// kernel: _forward_impl.7
$region0: #{_forward_impl.7}
  #allocation0 [shape = 'u32[]', space=smem, size = 0x4, offset = 0x4, fixed_abs, tag = 'smem constant byte address 0x4 - core index']
  #allocation1 [shape = 'u32[144,128]{1,0:T(1,128)}', space=vmem, size = 0x12000, scoped, tag = 'internal scratch']
  %s0 = inlined_call_operand.vmem [shape: f32[8,128], index: 0, kind: input, shape index: {}]
  %s1 = inlined_call_operand.vmem [shape: f32[8,128], index: 1, kind: output, shape index: {}]
  %s2 = sld [smem:[#allocation0]]
  $region14: #{_forward_impl.7} parent=0
    _
  %s4 = ssub.s32 1, %s2
  %s5 = scalar_select 0, %s4, %s2
  // Predicated region
  $region2: #{_forward_impl.7} parent=0 // pred_check
    _
  $region3: #{_forward_impl.7} parent=0 // pred_check_branch
    %7 = sbr.rel (0) target = $region5
  $region4: #{_forward_impl.7} parent=0 // pred_region
    _
  $region5: #{_forward_impl.7} parent=0 // pred_fallthru
    _
  %v8 = vld [vmem:[%s0] sm:$0xff]
  %9 = vmax.xlane.f32.xlu0 %v8
  %v10 = vpop.xlane.xlu0 %9
  %v11 = vrot.slane %v10, 4
  %v12 = vmax.f32 %v10, %v11
  %v13 = vrot.slane %v12, 2
  %v14 = vmax.f32 %v12, %v13
  %v15 = vrot.slane %v14, 1
  %v16 = vmax.f32 %v14, %v15
  %s17 = vtos %v16
  %v18 = vstv %s17
  %v19 = vsub.f32 %v8, %v18
  %v20 = vmul.f32 %v19, 1.442695
  %v21 = vpow.pop %v20
  %22 = vadd.xlane.f32.xlu0 %v21
  %v23 = vpop.xlane.xlu0 %22
  %v24 = vrot.slane %v23, 4
  %v25 = vadd.f32 %v23, %v24
  %v26 = vrot.slane %v25, 2
  %v27 = vadd.f32 %v25, %v26
  %v28 = vrot.slane %v27, 1
  %v29 = vadd.f32 %v27, %v28
  %s30 = vtos %v29
  %v31 = vstv %s30
  %v32 = vrcp.pop %v31
  %v33 = vmul.f32 %v21, %v32
  %34 = vst [vmem:[%s1] sm:$0xff] %v33
  // Predicated region
  $region6: #{_forward_impl.7} parent=0 // pred_check
    _
  $region7: #{_forward_impl.7} parent=0 // pred_check_branch
    %36 = sbr.rel (0) target = $region9
  $region8: #{_forward_impl.7} parent=0 // pred_region
    _
  $region9: #{_forward_impl.7} parent=0 // pred_fallthru
    _
  // Predicated region
  $region10: #{_forward_impl.7} parent=0 // pred_check
    _
  $region11: #{_forward_impl.7} parent=0 // pred_check_branch
    %38 = sbr.rel (0) target = $region13
  $region12: #{_forward_impl.7} parent=0 // pred_region
    _
  $region13: #{_forward_impl.7} parent=0 // pred_fallthru
    _

</llo_original>
